<compile_context>
chip_gen: v7x
topology: tpu7x:2x2x1
jax: 0.10.0
libtpu: 0.0.40
codegen_flags: <defaults>
</compile_context>

<pallas_src>
import functools

import jax
import jax.numpy as jnp
from jax.experimental import pallas as pl
from jax.experimental.pallas import tpu as pltpu


# ----------------------------------------------------------------------------
# In-kernel math
# ----------------------------------------------------------------------------
def _elu(x):
    # ELU with alpha=1.0 (matches F.elu default). exp lands on the EUP slot.
    # (expm1 would be marginally more accurate near 0 — abs error ~1e-7 —
    #  but exp is guaranteed to lower on Mosaic, so we keep exp(x)-1.)
    return jnp.where(x > 0, x, jnp.exp(x) - 1.0)


def _swish(x):
    # x * sigmoid(x).  exp runs in the activation dtype on the EUP; the divide
    # is an approximate EUP reciprocal in f32 (pl.reciprocal's supported
    # width) with no VALU Newton refinement, then cast back.
    denom = (1.0 + jnp.exp(-x)).astype(jnp.float32)
    sig = pl.reciprocal(denom, approx=True)
    return x * sig.astype(x.dtype)


def _linear(a, w_ref, b_ref, out_dtype):
    # MXU matmul in the weight dtype (bf16 recommended on every generation),
    # f32 accumulation, f32 bias add, then cast to the element-wise dtype.
    acc = jnp.dot(a.astype(w_ref.dtype), w_ref[...],
                  preferred_element_type=jnp.float32)
    return (acc + b_ref[...]).astype(out_dtype)


def line_model_kernel(
    x_ref,
    w_mlp_ref, b_mlp_ref,
    w1_ref, b1_ref,
    w2_ref, b2_ref,
    we_ref, be_ref,
    wf_ref, bf_ref,
    o_ref,
    *,
    act_dtype,
):
    # x = F.elu(self.mlp(x))                      -> (tile_rows, hid_p) act_dtype
    h = _elu(_linear(x_ref[...], w_mlp_ref, b_mlp_ref, act_dtype))

    # ResLine block (num_blocks = 1).
    residual = h
    out = _swish(_linear(h, w1_ref, b1_ref, act_dtype))
    out = _swish(_linear(out, w2_ref, b2_ref, act_dtype))
    out = _swish(_linear(out, we_ref, be_ref, act_dtype))
    h = out + residual * 0.5

    # x = self.final_fc(x)   (lane-dense (tile_rows, 128) store; extra output
    # lanes are exactly 0 because w_final/b_final are zero-padded; the wrapper
    # slices them off).
    o_ref[...] = _linear(h, wf_ref, bf_ref, jnp.float32).astype(o_ref.dtype)


# ----------------------------------------------------------------------------
# Wrapper
# ----------------------------------------------------------------------------
def _pad_to(a, axis, size):
    pad = size - a.shape[axis]
    if pad <= 0:
        return a
    widths = [(0, 0)] * a.ndim
    widths[axis] = (0, pad)
    return jnp.pad(a, widths)


def _default_act_dtype():
    # bf16 element-wise math on chips with a bf16 VPU/EUP (v6e, v7x);
    # f32 on v5e / v4 / unknown (no native bf16 VPU/EUP there).
    try:
        kind = jax.devices()[0].device_kind.lower()
    except Exception:
        return jnp.float32
    if "v6" in kind or "v7" in kind:
        return jnp.bfloat16
    return jnp.float32


def prepare_params(params, *, param_dtype=jnp.bfloat16):
    """One-time padding/casting of the params pytree.

    Hoisted out of the per-step forward so padded/cast weights are not
    re-materialized by XLA on every call in a render/training loop.

    * hidden width zero-padded to a multiple of 128 lanes (exact: padded
      pre-activations are 0 and ELU(0)=swish(0)=0),
    * final-layer output width zero-padded to 128 lanes (lane-dense store),
    * weights cast to `param_dtype` (bf16 recommended on all generations —
      the MXU takes bf16 operands even on v5e; accumulation stays f32),
    * biases kept in f32 (added to the f32 accumulator).
    """
    hidden_dim = params["w_mlp"].shape[1]
    output_dim = params["w_final"].shape[1]
    hid_p = 128 * pl.cdiv(hidden_dim, 128)
    out_p = 128 * pl.cdiv(output_dim, 128)
    cast = lambda a: a.astype(param_dtype)
    return dict(
        w_mlp=cast(_pad_to(params["w_mlp"], 1, hid_p)),
        b_mlp=_pad_to(params["b_mlp"], 1, hid_p),
        w1=cast(_pad_to(_pad_to(params["w1"], 0, hid_p), 1, hid_p)),
        b1=_pad_to(params["b1"], 1, hid_p),
        w2=cast(_pad_to(_pad_to(params["w2"], 0, hid_p), 1, hid_p)),
        b2=_pad_to(params["b2"], 1, hid_p),
        we=cast(_pad_to(_pad_to(params["we"], 0, hid_p), 1, hid_p)),
        be=_pad_to(params["be"], 1, hid_p),
        w_final=cast(_pad_to(_pad_to(params["w_final"], 0, hid_p), 1, out_p)),
        b_final=_pad_to(params["b_final"], 1, out_p),
    )


def line_model_forward(x, prep, output_dim, *, tile_rows=2048, act_dtype=None,
                       vmem_limit_bytes=48 * 1024 * 1024):
    """LineModel forward pass.

    x:          (N, input_dim) float32 (kept f32; only the MXU LHS is cast).
    prep:       padded/cast params from `prepare_params`.
    output_dim: logical output width (padded lanes are sliced off).
    tile_rows:  rows per grid step. 2048-4096 amortizes the ~0.35us per-step
                overhead; the kernel is MXU/EUP-bound and uses only a few MiB
                of VMEM, so this is safe on every generation.  tile_rows is
                automatically capped so the grid has >= 2 steps whenever N
                allows (v7x megacore sharding) and never pads far past N.
    act_dtype:  element-wise dtype; None -> bf16 on v6e/v7x, f32 otherwise.
    """
    N, input_dim = x.shape
    assert input_dim == prep["w_mlp"].shape[0]
    hid_p = prep["w_mlp"].shape[1]
    out_p = prep["w_final"].shape[1]
    if act_dtype is None:
        act_dtype = _default_act_dtype()
    assert tile_rows % 8 == 0, "tile_rows must be a multiple of 8 (sublanes)"

    # Don't pad far past N, and guarantee >= 2 grid steps when N allows so
    # dimension_semantics=("parallel",) shards across both TensorCores on v7x.
    tile_rows = min(tile_rows, 8 * pl.cdiv(N, 8))
    if N > 8:
        tile_rows = min(tile_rows, 8 * pl.cdiv(pl.cdiv(N, 2), 8))
    tile_rows = max(tile_rows, 8)

    # Pad rows to a multiple of tile_rows (padded rows are sliced off; rows
    # are independent so this is exact).
    n_pad = tile_rows * pl.cdiv(N, tile_rows)
    x_p = _pad_to(x, 0, n_pad)

    grid = (n_pad // tile_rows,)

    def wspec(shape):
        # Weights/biases: identical block every grid step (constant index_map
        # -> never re-DMA'd).
        # TODO(synk): pipeline_mode=pl.Buffered(1) would halve resident weight
        # VMEM (~0.2 MiB saving); left at the default for lowering robustness.
        return pl.BlockSpec(shape, lambda i: (0, 0))

    kernel = functools.partial(line_model_kernel, act_dtype=act_dtype)

    out = pl.pallas_call(
        kernel,
        out_shape=jax.ShapeDtypeStruct((n_pad, out_p), jnp.float32),
        grid_spec=pltpu.PrefetchScalarGridSpec(
            num_scalar_prefetch=0,
            grid=grid,
            in_specs=[
                pl.BlockSpec((tile_rows, input_dim), lambda i: (i, 0)),
                wspec((input_dim, hid_p)),
                wspec((1, hid_p)),
                wspec((hid_p, hid_p)),
                wspec((1, hid_p)),
                wspec((hid_p, hid_p)),
                wspec((1, hid_p)),
                wspec((hid_p, hid_p)),
                wspec((1, hid_p)),
                wspec((hid_p, out_p)),
                wspec((1, out_p)),
            ],
            out_specs=pl.BlockSpec((tile_rows, out_p), lambda i: (i, 0)),
        ),
        compiler_params=pltpu.CompilerParams(
            dimension_semantics=("parallel",),
            vmem_limit_bytes=vmem_limit_bytes,
        ),
    )(x_p, prep["w_mlp"], prep["b_mlp"], prep["w1"], prep["b1"],
      prep["w2"], prep["b2"], prep["we"], prep["be"],
      prep["w_final"], prep["b_final"])

    return out[:N, :output_dim]


# ----------------------------------------------------------------------------
# Init + reference
# ----------------------------------------------------------------------------
def init_params(key, input_dim, hidden_dim, output_dim):
    """Deterministic synthetic init.

    Weights follow kaiming_normal_ (std = sqrt(2 / fan_in)); biases follow
    PyTorch Linear default uniform(-1/sqrt(fan_in), 1/sqrt(fan_in)).
    Weights are stored as (in, out) so the kernel can do x @ W.
    """
    def linear(k, fan_in, fan_out):
        kw, kb = jax.random.split(k)
        std = (2.0 / fan_in) ** 0.5
        w = std * jax.random.normal(kw, (fan_in, fan_out), dtype=jnp.float32)
        bound = 1.0 / (fan_in ** 0.5)
        b = jax.random.uniform(
            kb, (1, fan_out), minval=-bound, maxval=bound, dtype=jnp.float32
        )
        return w, b

    keys = jax.random.split(key, 5)
    w_mlp, b_mlp = linear(keys[0], input_dim, hidden_dim)
    w1, b1 = linear(keys[1], hidden_dim, hidden_dim)       # ResLine.fc1
    w2, b2 = linear(keys[2], hidden_dim, hidden_dim)       # ResLine.fc2
    we, be = linear(keys[3], hidden_dim, hidden_dim)       # ResLine.extra_fc
    w_final, b_final = linear(keys[4], hidden_dim, output_dim)
    return dict(
        w_mlp=w_mlp, b_mlp=b_mlp,
        w1=w1, b1=b1, w2=w2, b2=b2, we=we, be=be,
        w_final=w_final, b_final=b_final,
    )


def reference_forward(x, p):
    """Pure-JAX f32 reference matching the PyTorch forward (exact sigmoid)."""
    sw = lambda a: a * jax.nn.sigmoid(a)
    h = jax.nn.elu(x @ p["w_mlp"] + p["b_mlp"])
    r = h
    o = sw(h @ p["w1"] + p["b1"])
    o = sw(o @ p["w2"] + p["b2"])
    o = sw(o @ p["we"] + p["be"])
    h = o + 0.5 * r
    return h @ p["w_final"] + p["b_final"]


# ----------------------------------------------------------------------------
# Test
# ----------------------------------------------------------------------------
if __name__ == "__main__":
    key = jax.random.PRNGKey(0)
    k_param, k_x = jax.random.split(key)

    # Small, module-consistent shapes; N is intentionally ragged (300) to
    # exercise the row-padding path.
    N, input_dim, hidden_dim, output_dim = 300, 16, 32, 8
    params = init_params(k_param, input_dim, hidden_dim, output_dim)
    x = jax.random.normal(k_x, (N, input_dim), dtype=jnp.float32)

    ref = reference_forward(x, params)
    scale = float(jnp.max(jnp.abs(ref)))

    def max_err(a):
        return float(jnp.max(jnp.abs(a - ref)))

    # 1) f32 params + f32 element-wise, small tiles -> ragged multi-tile grid
    #    (3 tiles of 128).  Tolerance leaves room for the approx EUP
    #    reciprocal used in swish (~1e-3 level effect on outputs).
    prep_f32 = prepare_params(params, param_dtype=jnp.float32)
    out_f32 = jax.block_until_ready(
        line_model_forward(x, prep_f32, output_dim,
                           tile_rows=128, act_dtype=jnp.float32))
    assert out_f32.shape == (N, output_dim)
    e = max_err(out_f32)
    assert e < 6e-2, f"f32 path max abs error too large: {e}"

    # 2) bf16 MXU operands (recommended on every generation incl. v5e),
    #    f32 element-wise path.  Default tiling -> 2-step grid (megacore-safe).
    prep_bf16 = prepare_params(params)  # param_dtype=bfloat16 default
    out_mxu = jax.block_until_ready(
        line_model_forward(x, prep_bf16, output_dim, act_dtype=jnp.float32))
    assert out_mxu.shape == (N, output_dim)
    e = max_err(out_mxu)
    assert e < 0.04 * (scale + 1.0), f"bf16-MXU path error too large: {e}"

    # 3) Default fast path: bf16 MXU everywhere + bf16 element-wise on v6e/v7x
    #    (auto-falls back to f32 element-wise on v5e/v4).
    out_fast = jax.block_until_ready(
        line_model_forward(x, prep_bf16, output_dim))
    assert out_fast.shape == (N, output_dim)
    assert bool(jnp.all(jnp.isfinite(out_fast)))
    e = max_err(out_fast)
    assert e < 0.08 * (scale + 1.0), f"fast path error too large: {e}"

    print("KERNEL_OK")
</pallas_src>

<mosaic_0001>
module attributes {stable_mosaic.version = 11 : i64} {
  func.func @line_model_kernel(%arg0: i32, %arg1: memref<128x16xf32, #tpu.memory_space<vmem>>, %arg2: memref<16x128xf32, #tpu.memory_space<vmem>>, %arg3: memref<1x128xf32, #tpu.memory_space<vmem>>, %arg4: memref<128x128xf32, #tpu.memory_space<vmem>>, %arg5: memref<1x128xf32, #tpu.memory_space<vmem>>, %arg6: memref<128x128xf32, #tpu.memory_space<vmem>>, %arg7: memref<1x128xf32, #tpu.memory_space<vmem>>, %arg8: memref<128x128xf32, #tpu.memory_space<vmem>>, %arg9: memref<1x128xf32, #tpu.memory_space<vmem>>, %arg10: memref<128x128xf32, #tpu.memory_space<vmem>>, %arg11: memref<1x128xf32, #tpu.memory_space<vmem>>, %arg12: memref<128x128xf32, #tpu.memory_space<vmem>>) attributes {dimension_semantics = [#tpu.dimension_semantics<parallel>], iteration_bounds = array<i64: 3>, scalar_prefetch = 0 : i64, scratch_operands = 0 : i64, tpu.core_type = #tpu.core_type<tc>, window_params = [{transform_indices = @transform_0, window_bounds = array<i64: 128, 16>}, {pipeline_mode = #tpu.pipeline_mode<synchronous>, transform_indices = @transform_1, window_bounds = array<i64: 16, 128>}, {pipeline_mode = #tpu.pipeline_mode<synchronous>, transform_indices = @transform_2, window_bounds = array<i64: 1, 128>}, {pipeline_mode = #tpu.pipeline_mode<synchronous>, transform_indices = @transform_3, window_bounds = array<i64: 128, 128>}, {pipeline_mode = #tpu.pipeline_mode<synchronous>, transform_indices = @transform_4, window_bounds = array<i64: 1, 128>}, {pipeline_mode = #tpu.pipeline_mode<synchronous>, transform_indices = @transform_5, window_bounds = array<i64: 128, 128>}, {pipeline_mode = #tpu.pipeline_mode<synchronous>, transform_indices = @transform_6, window_bounds = array<i64: 1, 128>}, {pipeline_mode = #tpu.pipeline_mode<synchronous>, transform_indices = @transform_7, window_bounds = array<i64: 128, 128>}, {pipeline_mode = #tpu.pipeline_mode<synchronous>, transform_indices = @transform_8, window_bounds = array<i64: 1, 128>}, {pipeline_mode = #tpu.pipeline_mode<synchronous>, transform_indices = @transform_9, window_bounds = array<i64: 128, 128>}, {pipeline_mode = #tpu.pipeline_mode<synchronous>, transform_indices = @transform_10, window_bounds = array<i64: 1, 128>}, {transform_indices = @transform_11, window_bounds = array<i64: 128, 128>}]} {
    %c0 = arith.constant 0 : index
    %c0_0 = arith.constant 0 : index
    %0 = vector.load %arg1[%c0, %c0_0] : memref<128x16xf32, #tpu.memory_space<vmem>>, vector<128x16xf32>
    %c0_1 = arith.constant 0 : index
    %c0_2 = arith.constant 0 : index
    %1 = vector.load %arg2[%c0_1, %c0_2] : memref<16x128xf32, #tpu.memory_space<vmem>>, vector<16x128xf32>
    %cst = arith.constant dense<0.000000e+00> : vector<128x128xf32>
    %2 = tpu.matmul %0, %1, %cst {dimension_numbers = #tpu.dot_dimension_numbers<[1], [0], [0], [1], [0, 0, 1, 1], [], []>} : vector<128x16xf32>, vector<16x128xf32>, vector<128x128xf32> -> vector<128x128xf32>
    %c0_3 = arith.constant 0 : index
    %c0_4 = arith.constant 0 : index
    %3 = vector.load %arg3[%c0_3, %c0_4] : memref<1x128xf32, #tpu.memory_space<vmem>>, vector<1x128xf32>
    %4 = vector.broadcast %3 : vector<1x128xf32> to vector<128x128xf32>
    %5 = arith.addf %2, %4 : vector<128x128xf32>
    %cst_5 = arith.constant 0.000000e+00 : f32
    %6 = vector.broadcast %cst_5 : f32 to vector<128x128xf32>
    %7 = arith.cmpf ogt, %5, %6 : vector<128x128xf32>
    %8 = math.exp %5 : vector<128x128xf32>
    %cst_6 = arith.constant 1.000000e+00 : f32
    %9 = vector.broadcast %cst_6 : f32 to vector<128x128xf32>
    %10 = arith.subf %8, %9 : vector<128x128xf32>
    %11 = arith.select %7, %5, %10 : vector<128x128xi1>, vector<128x128xf32>
    %c0_7 = arith.constant 0 : index
    %c0_8 = arith.constant 0 : index
    %12 = vector.load %arg4[%c0_7, %c0_8] : memref<128x128xf32, #tpu.memory_space<vmem>>, vector<128x128xf32>
    %cst_9 = arith.constant dense<0.000000e+00> : vector<128x128xf32>
    %13 = tpu.matmul %11, %12, %cst_9 {dimension_numbers = #tpu.dot_dimension_numbers<[1], [0], [0], [1], [0, 0, 1, 1], [], []>} : vector<128x128xf32>, vector<128x128xf32>, vector<128x128xf32> -> vector<128x128xf32>
    %c0_10 = arith.constant 0 : index
    %c0_11 = arith.constant 0 : index
    %14 = vector.load %arg5[%c0_10, %c0_11] : memref<1x128xf32, #tpu.memory_space<vmem>>, vector<1x128xf32>
    %15 = vector.broadcast %14 : vector<1x128xf32> to vector<128x128xf32>
    %16 = arith.addf %13, %15 : vector<128x128xf32>
    %cst_12 = arith.constant 0.000000e+00 : f32
    %17 = vector.broadcast %cst_12 : f32 to vector<128x128xf32>
    %18 = arith.subf %17, %16 : vector<128x128xf32>
    %19 = math.exp %18 : vector<128x128xf32>
    %cst_13 = arith.constant 1.000000e+00 : f32
    %20 = vector.broadcast %cst_13 : f32 to vector<128x128xf32>
    %21 = arith.addf %20, %19 : vector<128x128xf32>
    %22 = tpu.reciprocal %21 {approx = true} : vector<128x128xf32> -> vector<128x128xf32>
    %23 = arith.mulf %16, %22 : vector<128x128xf32>
    %c0_14 = arith.constant 0 : index
    %c0_15 = arith.constant 0 : index
    %24 = vector.load %arg6[%c0_14, %c0_15] : memref<128x128xf32, #tpu.memory_space<vmem>>, vector<128x128xf32>
    %cst_16 = arith.constant dense<0.000000e+00> : vector<128x128xf32>
    %25 = tpu.matmul %23, %24, %cst_16 {dimension_numbers = #tpu.dot_dimension_numbers<[1], [0], [0], [1], [0, 0, 1, 1], [], []>} : vector<128x128xf32>, vector<128x128xf32>, vector<128x128xf32> -> vector<128x128xf32>
    %c0_17 = arith.constant 0 : index
    %c0_18 = arith.constant 0 : index
    %26 = vector.load %arg7[%c0_17, %c0_18] : memref<1x128xf32, #tpu.memory_space<vmem>>, vector<1x128xf32>
    %27 = vector.broadcast %26 : vector<1x128xf32> to vector<128x128xf32>
    %28 = arith.addf %25, %27 : vector<128x128xf32>
    %cst_19 = arith.constant 0.000000e+00 : f32
    %29 = vector.broadcast %cst_19 : f32 to vector<128x128xf32>
    %30 = arith.subf %29, %28 : vector<128x128xf32>
    %31 = math.exp %30 : vector<128x128xf32>
    %cst_20 = arith.constant 1.000000e+00 : f32
    %32 = vector.broadcast %cst_20 : f32 to vector<128x128xf32>
    %33 = arith.addf %32, %31 : vector<128x128xf32>
    %34 = tpu.reciprocal %33 {approx = true} : vector<128x128xf32> -> vector<128x128xf32>
    %35 = arith.mulf %28, %34 : vector<128x128xf32>
    %c0_21 = arith.constant 0 : index
    %c0_22 = arith.constant 0 : index
    %36 = vector.load %arg8[%c0_21, %c0_22] : memref<128x128xf32, #tpu.memory_space<vmem>>, vector<128x128xf32>
    %cst_23 = arith.constant dense<0.000000e+00> : vector<128x128xf32>
    %37 = tpu.matmul %35, %36, %cst_23 {dimension_numbers = #tpu.dot_dimension_numbers<[1], [0], [0], [1], [0, 0, 1, 1], [], []>} : vector<128x128xf32>, vector<128x128xf32>, vector<128x128xf32> -> vector<128x128xf32>
    %c0_24 = arith.constant 0 : index
    %c0_25 = arith.constant 0 : index
    %38 = vector.load %arg9[%c0_24, %c0_25] : memref<1x128xf32, #tpu.memory_space<vmem>>, vector<1x128xf32>
    %39 = vector.broadcast %38 : vector<1x128xf32> to vector<128x128xf32>
    %40 = arith.addf %37, %39 : vector<128x128xf32>
    %cst_26 = arith.constant 0.000000e+00 : f32
    %41 = vector.broadcast %cst_26 : f32 to vector<128x128xf32>
    %42 = arith.subf %41, %40 : vector<128x128xf32>
    %43 = math.exp %42 : vector<128x128xf32>
    %cst_27 = arith.constant 1.000000e+00 : f32
    %44 = vector.broadcast %cst_27 : f32 to vector<128x128xf32>
    %45 = arith.addf %44, %43 : vector<128x128xf32>
    %46 = tpu.reciprocal %45 {approx = true} : vector<128x128xf32> -> vector<128x128xf32>
    %47 = arith.mulf %40, %46 : vector<128x128xf32>
    %cst_28 = arith.constant 5.000000e-01 : f32
    %48 = vector.broadcast %cst_28 : f32 to vector<128x128xf32>
    %49 = arith.mulf %11, %48 : vector<128x128xf32>
    %50 = arith.addf %47, %49 : vector<128x128xf32>
    %c0_29 = arith.constant 0 : index
    %c0_30 = arith.constant 0 : index
    %51 = vector.load %arg10[%c0_29, %c0_30] : memref<128x128xf32, #tpu.memory_space<vmem>>, vector<128x128xf32>
    %cst_31 = arith.constant dense<0.000000e+00> : vector<128x128xf32>
    %52 = tpu.matmul %50, %51, %cst_31 {dimension_numbers = #tpu.dot_dimension_numbers<[1], [0], [0], [1], [0, 0, 1, 1], [], []>} : vector<128x128xf32>, vector<128x128xf32>, vector<128x128xf32> -> vector<128x128xf32>
    %c0_32 = arith.constant 0 : index
    %c0_33 = arith.constant 0 : index
    %53 = vector.load %arg11[%c0_32, %c0_33] : memref<1x128xf32, #tpu.memory_space<vmem>>, vector<1x128xf32>
    %54 = vector.broadcast %53 : vector<1x128xf32> to vector<128x128xf32>
    %55 = arith.addf %52, %54 : vector<128x128xf32>
    %c0_34 = arith.constant 0 : index
    %c0_35 = arith.constant 0 : index
    %56 = vector.load %arg12[%c0_34, %c0_35] : memref<128x128xf32, #tpu.memory_space<vmem>>, vector<128x128xf32>
    tpu.vector_store %arg12[%c0_34, %c0_35], %55 {strides = array<i32>} : memref<128x128xf32, #tpu.memory_space<vmem>>, vector<128x128xf32>,
    return
  }
  func.func @transform_0(%arg0: i32) -> (i32, i32) {
    %c0_i32 = arith.constant 0 : i32
    %c0_i32_0 = arith.constant 0 : i32
    return %arg0, %c0_i32 : i32, i32
  }
  func.func @transform_1(%arg0: i32) -> (i32, i32) {
    %c0_i32 = arith.constant 0 : i32
    %c0_i32_0 = arith.constant 0 : i32
    %c0_i32_1 = arith.constant 0 : i32
    return %c0_i32, %c0_i32_0 : i32, i32
  }
  func.func @transform_2(%arg0: i32) -> (i32, i32) {
    %c0_i32 = arith.constant 0 : i32
    %c0_i32_0 = arith.constant 0 : i32
    %c0_i32_1 = arith.constant 0 : i32
    return %c0_i32, %c0_i32_0 : i32, i32
  }
  func.func @transform_3(%arg0: i32) -> (i32, i32) {
    %c0_i32 = arith.constant 0 : i32
    %c0_i32_0 = arith.constant 0 : i32
    %c0_i32_1 = arith.constant 0 : i32
    return %c0_i32, %c0_i32_0 : i32, i32
  }
  func.func @transform_4(%arg0: i32) -> (i32, i32) {
    %c0_i32 = arith.constant 0 : i32
    %c0_i32_0 = arith.constant 0 : i32
    %c0_i32_1 = arith.constant 0 : i32
    return %c0_i32, %c0_i32_0 : i32, i32
  }
  func.func @transform_5(%arg0: i32) -> (i32, i32) {
    %c0_i32 = arith.constant 0 : i32
    %c0_i32_0 = arith.constant 0 : i32
    %c0_i32_1 = arith.constant 0 : i32
    return %c0_i32, %c0_i32_0 : i32, i32
  }
  func.func @transform_6(%arg0: i32) -> (i32, i32) {
    %c0_i32 = arith.constant 0 : i32
    %c0_i32_0 = arith.constant 0 : i32
    %c0_i32_1 = arith.constant 0 : i32
    return %c0_i32, %c0_i32_0 : i32, i32
  }
  func.func @transform_7(%arg0: i32) -> (i32, i32) {
    %c0_i32 = arith.constant 0 : i32
    %c0_i32_0 = arith.constant 0 : i32
    %c0_i32_1 = arith.constant 0 : i32
    return %c0_i32, %c0_i32_0 : i32, i32
  }
  func.func @transform_8(%arg0: i32) -> (i32, i32) {
    %c0_i32 = arith.constant 0 : i32
    %c0_i32_0 = arith.constant 0 : i32
    %c0_i32_1 = arith.constant 0 : i32
    return %c0_i32, %c0_i32_0 : i32, i32
  }
  func.func @transform_9(%arg0: i32) -> (i32, i32) {
    %c0_i32 = arith.constant 0 : i32
    %c0_i32_0 = arith.constant 0 : i32
    %c0_i32_1 = arith.constant 0 : i32
    return %c0_i32, %c0_i32_0 : i32, i32
  }
  func.func @transform_10(%arg0: i32) -> (i32, i32) {
    %c0_i32 = arith.constant 0 : i32
    %c0_i32_0 = arith.constant 0 : i32
    %c0_i32_1 = arith.constant 0 : i32
    return %c0_i32, %c0_i32_0 : i32, i32
  }
  func.func @transform_11(%arg0: i32) -> (i32, i32) {
    %c0_i32 = arith.constant 0 : i32
    %c0_i32_0 = arith.constant 0 : i32
    return %arg0, %c0_i32 : i32, i32
  }
}

</mosaic_0001>

<llo_original>
// kernel: tpu_custom_call.1
$region0: #{tpu_custom_call.1}
  #allocation0 [shape = 'u32[]', space=smem, size = 0x4, offset = 0x4, fixed_abs, tag = 'smem constant byte address 0x4 - core index']
  #allocation1 [shape = 'u32[144,128]{1,0:T(1,128)}', space=vmem, size = 0x12000, scoped, tag = 'internal scratch']
  %s0 = inlined_call_operand.vmem [shape: f32[384,16], index: 0, kind: input, shape index: {}]
  %s1 = inlined_call_operand.vmem [shape: f32[16,128], index: 1, kind: input, shape index: {}]
  %s2 = inlined_call_operand.vmem [shape: f32[1,128], index: 2, kind: input, shape index: {}]
  %s3 = inlined_call_operand.vmem [shape: f32[128,128], index: 3, kind: input, shape index: {}]
  %s4 = inlined_call_operand.vmem [shape: f32[1,128], index: 4, kind: input, shape index: {}]
  %s5 = inlined_call_operand.vmem [shape: f32[128,128], index: 5, kind: input, shape index: {}]
  %s6 = inlined_call_operand.vmem [shape: f32[1,128], index: 6, kind: input, shape index: {}]
  %s7 = inlined_call_operand.vmem [shape: f32[128,128], index: 7, kind: input, shape index: {}]
  %s8 = inlined_call_operand.vmem [shape: f32[1,128], index: 8, kind: input, shape index: {}]
  %s9 = inlined_call_operand.hbm [shape: f32[128,128], index: 9, kind: input, shape index: {}]
  %s10 = inlined_call_operand.vmem [shape: f32[1,128], index: 10, kind: input, shape index: {}]
  %s11 = inlined_call_operand.hbm [shape: f32[384,128], index: 11, kind: output, shape index: {}]
  %s12 = sld [smem:[#allocation0]]
  $region81: #{tpu_custom_call.1} parent=0
    _
  %s14 = ssub.s32 1, %s12
  %s15 = scalar_select 0, %s14, %s12
  $region1: #{tpu_custom_call.1} parent=0
    #allocation2 [shape = 'u8[65536]{0}', space=vmem, size = 0x10000, scoped, tag = 'input window, operand 9, single buffered']
    #allocation3 [shape = 's32[2]{0}', space=sflag, size = 0x8, scoped, tag = 'scoped memory for tpu_custom_call.1']
    #allocation4 [shape = 's32[2]{0}', space=sflag, size = 0x8, scoped, tag = 'scoped memory for tpu_custom_call.1']
    #allocation5 [shape = 'u8[131072]{0}', space=vmem, size = 0x20000, scoped, tag = 'output window, operand 0']
    %16 = vsyncpa [#allocation3], 0
    %17 = vsyncpa [#allocation4], 0
    %s18 = scalar_lea.sflag [#allocation4], 1
    %19 = vsyncpa %s18, 0
    loop: start=0, step=1, limit=5
    $region2: #{tpu_custom_call.1} parent=1 // loop_pre_header
      _
    $region3: #{tpu_custom_call.1} parent=1 // loop_header
      %s21 = sphi 0, %s25
      %p22 = scmp.ge.s32.totalorder %s21, 5
      %s31 = sphi 0, %s33
      %s34 = sphi 0, %s31
      %s35 = sphi 0, %s34
      %s51 = sphi 0, %s35
      %s55 = sphi 0, %s55
      %s57 = sphi 0, %s55
      %s58 = sphi 0, %s57
      %s72 = sphi 0, %s58
      %s76 = sphi 0, %s76
      %s78 = sphi 0, %s76
      %s79 = sphi 0, %s78
      %s93 = sphi 0, %s79
      %s97 = sphi 0, %s97
      %s99 = sphi 0, %s97
      %s100 = sphi 0, %s99
      %s114 = sphi 0, %s100
      %s118 = sphi 0, %s118
      %s120 = sphi 0, %s118
      %s121 = sphi 0, %s120
      %s135 = sphi 0, %s121
      %s139 = sphi 0, %s139
      %s141 = sphi 0, %s139
      %s142 = sphi 0, %s141
      %s156 = sphi 0, %s142
      %s160 = sphi 0, %s160
      %s162 = sphi 0, %s160
      %s163 = sphi 0, %s162
      %s177 = sphi 0, %s163
      %s181 = sphi 0, %s181
      %s183 = sphi 0, %s181
      %s184 = sphi 0, %s183
      %s198 = sphi 0, %s184
      %s202 = sphi 0, %s202
      %s204 = sphi 0, %s202
      %s205 = sphi 0, %s204
      %s219 = sphi 0, %s205
      %s223 = sphi 0, %s223
      %s225 = sphi 0, %s223
      %s226 = sphi 0, %s225
      %s240 = sphi 0, %s226
      %s244 = sphi 0, %s244
      %s246 = sphi 0, %s244
      %s247 = sphi 0, %s246
      %s261 = sphi 0, %s247
      %s267 = sphi 0, %s269
      %s270 = sphi 0, %s267
      %s271 = sphi 0, %s270
      %s287 = sphi 0, %s271
    $region4: #{tpu_custom_call.1} parent=1 // loop_header_branch
      %24 = sbr.rel (%p22) target = $region8
    $region5: #{tpu_custom_call.1} parent=1 // loop_body
      %s26 = ssub.s32 %s21, 1
      %s27 = ssub.s32 %s21, 2
      %s28 = sadd.s32 %s21, 1
      %s29 = ssub.s32 %s21, %s28
      %p30 = scmp.eq.s32.totalorder %s29, 0
      %s32 = sadd.s32 %s31, 1
      %s33 = scalar_select %p30, %s31, %s32
      %p36 = pneg %p30
      %p37 = scmp.eq.s32.totalorder %s21, 2
      %p38 = por %p36, %p37
      %p39 = scmp.ne.s32.totalorder %s31, %s34
      %p40 = scmp.eq.s32.totalorder %s21, 0
      %p41 = por %p39, %p40
      %p42 = scmp.ne.s32.totalorder %s31, %s34
      %p43 = scmp.eq.s32.totalorder %s26, 2
      %p44 = por %p42, %p43
      %p45 = scmp.ne.s32.totalorder %s34, %s35
      %p46 = scmp.eq.s32.totalorder %s26, 0
      %p47 = por %p45, %p46
      %p48 = scmp.ne.s32.totalorder %s34, %s35
      %p49 = scmp.eq.s32.totalorder %s27, 2
      %p50 = por %p48, %p49
      %p52 = scmp.ne.s32.totalorder %s35, %s51
      %p53 = scmp.eq.s32.totalorder %s27, 0
      %p54 = por %p52, %p53
      %s56 = sadd.s32 %s55, 1
      %p59 = scmp.eq.s32.totalorder %s21, 2
      %p60 = scmp.ne.s32.totalorder %s55, %s57
      %p61 = scmp.eq.s32.totalorder %s21, 0
      %p62 = por %p60, %p61
      %p63 = scmp.ne.s32.totalorder %s55, %s57
      %p64 = scmp.eq.s32.totalorder %s26, 2
      %p65 = por %p63, %p64
      %p66 = scmp.ne.s32.totalorder %s57, %s58
      %p67 = scmp.eq.s32.totalorder %s26, 0
      %p68 = por %p66, %p67
      %p69 = scmp.ne.s32.totalorder %s57, %s58
      %p70 = scmp.eq.s32.totalorder %s27, 2
      %p71 = por %p69, %p70
      %p73 = scmp.ne.s32.totalorder %s58, %s72
      %p74 = scmp.eq.s32.totalorder %s27, 0
      %p75 = por %p73, %p74
      %s77 = sadd.s32 %s76, 1
      %p80 = scmp.eq.s32.totalorder %s21, 2
      %p81 = scmp.ne.s32.totalorder %s76, %s78
      %p82 = scmp.eq.s32.totalorder %s21, 0
      %p83 = por %p81, %p82
      %p84 = scmp.ne.s32.totalorder %s76, %s78
      %p85 = scmp.eq.s32.totalorder %s26, 2
      %p86 = por %p84, %p85
      %p87 = scmp.ne.s32.totalorder %s78, %s79
      %p88 = scmp.eq.s32.totalorder %s26, 0
      %p89 = por %p87, %p88
      %p90 = scmp.ne.s32.totalorder %s78, %s79
      %p91 = scmp.eq.s32.totalorder %s27, 2
      %p92 = por %p90, %p91
      %p94 = scmp.ne.s32.totalorder %s79, %s93
      %p95 = scmp.eq.s32.totalorder %s27, 0
      %p96 = por %p94, %p95
      %s98 = sadd.s32 %s97, 1
      %p101 = scmp.eq.s32.totalorder %s21, 2
      %p102 = scmp.ne.s32.totalorder %s97, %s99
      %p103 = scmp.eq.s32.totalorder %s21, 0
      %p104 = por %p102, %p103
      %p105 = scmp.ne.s32.totalorder %s97, %s99
      %p106 = scmp.eq.s32.totalorder %s26, 2
      %p107 = por %p105, %p106
      %p108 = scmp.ne.s32.totalorder %s99, %s100
      %p109 = scmp.eq.s32.totalorder %s26, 0
      %p110 = por %p108, %p109
      %p111 = scmp.ne.s32.totalorder %s99, %s100
      %p112 = scmp.eq.s32.totalorder %s27, 2
      %p113 = por %p111, %p112
      %p115 = scmp.ne.s32.totalorder %s100, %s114
      %p116 = scmp.eq.s32.totalorder %s27, 0
      %p117 = por %p115, %p116
      %s119 = sadd.s32 %s118, 1
      %p122 = scmp.eq.s32.totalorder %s21, 2
      %p123 = scmp.ne.s32.totalorder %s118, %s120
      %p124 = scmp.eq.s32.totalorder %s21, 0
      %p125 = por %p123, %p124
      %p126 = scmp.ne.s32.totalorder %s118, %s120
      %p127 = scmp.eq.s32.totalorder %s26, 2
      %p128 = por %p126, %p127
      %p129 = scmp.ne.s32.totalorder %s120, %s121
      %p130 = scmp.eq.s32.totalorder %s26, 0
      %p131 = por %p129, %p130
      %p132 = scmp.ne.s32.totalorder %s120, %s121
      %p133 = scmp.eq.s32.totalorder %s27, 2
      %p134 = por %p132, %p133
      %p136 = scmp.ne.s32.totalorder %s121, %s135
      %p137 = scmp.eq.s32.totalorder %s27, 0
      %p138 = por %p136, %p137
      %s140 = sadd.s32 %s139, 1
      %p143 = scmp.eq.s32.totalorder %s21, 2
      %p144 = scmp.ne.s32.totalorder %s139, %s141
      %p145 = scmp.eq.s32.totalorder %s21, 0
      %p146 = por %p144, %p145
      %p147 = scmp.ne.s32.totalorder %s139, %s141
      %p148 = scmp.eq.s32.totalorder %s26, 2
      %p149 = por %p147, %p148
      %p150 = scmp.ne.s32.totalorder %s141, %s142
      %p151 = scmp.eq.s32.totalorder %s26, 0
      %p152 = por %p150, %p151
      %p153 = scmp.ne.s32.totalorder %s141, %s142
      %p154 = scmp.eq.s32.totalorder %s27, 2
      %p155 = por %p153, %p154
      %p157 = scmp.ne.s32.totalorder %s142, %s156
      %p158 = scmp.eq.s32.totalorder %s27, 0
      %p159 = por %p157, %p158
      %s161 = sadd.s32 %s160, 1
      %p164 = scmp.eq.s32.totalorder %s21, 2
      %p165 = scmp.ne.s32.totalorder %s160, %s162
      %p166 = scmp.eq.s32.totalorder %s21, 0
      %p167 = por %p165, %p166
      %p168 = scmp.ne.s32.totalorder %s160, %s162
      %p169 = scmp.eq.s32.totalorder %s26, 2
      %p170 = por %p168, %p169
      %p171 = scmp.ne.s32.totalorder %s162, %s163
      %p172 = scmp.eq.s32.totalorder %s26, 0
      %p173 = por %p171, %p172
      %p174 = scmp.ne.s32.totalorder %s162, %s163
      %p175 = scmp.eq.s32.totalorder %s27, 2
      %p176 = por %p174, %p175
      %p178 = scmp.ne.s32.totalorder %s163, %s177
      %p179 = scmp.eq.s32.totalorder %s27, 0
      %p180 = por %p178, %p179
      %s182 = sadd.s32 %s181, 1
      %p185 = scmp.eq.s32.totalorder %s21, 2
      %p186 = scmp.ne.s32.totalorder %s181, %s183
      %p187 = scmp.eq.s32.totalorder %s21, 0
      %p188 = por %p186, %p187
      %p189 = scmp.ne.s32.totalorder %s181, %s183
      %p190 = scmp.eq.s32.totalorder %s26, 2
      %p191 = por %p189, %p190
      %p192 = scmp.ne.s32.totalorder %s183, %s184
      %p193 = scmp.eq.s32.totalorder %s26, 0
      %p194 = por %p192, %p193
      %p195 = scmp.ne.s32.totalorder %s183, %s184
      %p196 = scmp.eq.s32.totalorder %s27, 2
      %p197 = por %p195, %p196
      %p199 = scmp.ne.s32.totalorder %s184, %s198
      %p200 = scmp.eq.s32.totalorder %s27, 0
      %p201 = por %p199, %p200
      %s203 = sadd.s32 %s202, 1
      %p206 = scmp.eq.s32.totalorder %s21, 2
      %p207 = scmp.ne.s32.totalorder %s202, %s204
      %p208 = scmp.eq.s32.totalorder %s21, 0
      %p209 = por %p207, %p208
      %p210 = scmp.ne.s32.totalorder %s202, %s204
      %p211 = scmp.eq.s32.totalorder %s26, 2
      %p212 = por %p210, %p211
      %p213 = scmp.ne.s32.totalorder %s204, %s205
      %p214 = scmp.eq.s32.totalorder %s26, 0
      %p215 = por %p213, %p214
      %p216 = scmp.ne.s32.totalorder %s204, %s205
      %p217 = scmp.eq.s32.totalorder %s27, 2
      %p218 = por %p216, %p217
      %p220 = scmp.ne.s32.totalorder %s205, %s219
      %p221 = scmp.eq.s32.totalorder %s27, 0
      %p222 = por %p220, %p221
      %s224 = sadd.s32 %s223, 1
      %p227 = scmp.eq.s32.totalorder %s21, 2
      %p228 = scmp.ne.s32.totalorder %s223, %s225
      %p229 = scmp.eq.s32.totalorder %s21, 0
      %p230 = por %p228, %p229
      %p231 = scmp.ne.s32.totalorder %s223, %s225
      %p232 = scmp.eq.s32.totalorder %s26, 2
      %p233 = por %p231, %p232
      %p234 = scmp.ne.s32.totalorder %s225, %s226
      %p235 = scmp.eq.s32.totalorder %s26, 0
      %p236 = por %p234, %p235
      %p237 = scmp.ne.s32.totalorder %s225, %s226
      %p238 = scmp.eq.s32.totalorder %s27, 2
      %p239 = por %p237, %p238
      %p241 = scmp.ne.s32.totalorder %s226, %s240
      %p242 = scmp.eq.s32.totalorder %s27, 0
      %p243 = por %p241, %p242
      %s245 = sadd.s32 %s244, 1
      %p248 = scmp.eq.s32.totalorder %s21, 2
      %p249 = scmp.ne.s32.totalorder %s244, %s246
      %p250 = scmp.eq.s32.totalorder %s21, 0
      %p251 = por %p249, %p250
      %p252 = scmp.ne.s32.totalorder %s244, %s246
      %p253 = scmp.eq.s32.totalorder %s26, 2
      %p254 = por %p252, %p253
      %p255 = scmp.ne.s32.totalorder %s246, %s247
      %p256 = scmp.eq.s32.totalorder %s26, 0
      %p257 = por %p255, %p256
      %p258 = scmp.ne.s32.totalorder %s246, %s247
      %p259 = scmp.eq.s32.totalorder %s27, 2
      %p260 = por %p258, %p259
      %p262 = scmp.ne.s32.totalorder %s247, %s261
      %p263 = scmp.eq.s32.totalorder %s27, 0
      %p264 = por %p262, %p263
      %s265 = ssub.s32 %s21, %s28
      %p266 = scmp.eq.s32.totalorder %s265, 0
      %s268 = sadd.s32 %s267, 1
      %s269 = scalar_select %p266, %s267, %s268
      %p272 = pneg %p266
      %p273 = scmp.eq.s32.totalorder %s21, 2
      %p274 = por %p272, %p273
      %p275 = scmp.ne.s32.totalorder %s267, %s270
      %p276 = scmp.eq.s32.totalorder %s21, 0
      %p277 = por %p275, %p276
      %p278 = scmp.ne.s32.totalorder %s267, %s270
      %p279 = scmp.eq.s32.totalorder %s26, 2
      %p280 = por %p278, %p279
      %p281 = scmp.ne.s32.totalorder %s270, %s271
      %p282 = scmp.eq.s32.totalorder %s26, 0
      %p283 = por %p281, %p282
      %p284 = scmp.ne.s32.totalorder %s270, %s271
      %p285 = scmp.eq.s32.totalorder %s27, 2
      %p286 = por %p284, %p285
      %p288 = scmp.ne.s32.totalorder %s271, %s287
      %p289 = scmp.eq.s32.totalorder %s27, 0
      %p290 = por %p288, %p289
      %p291 = scmp.le.s32.totalorder 1, %s21
      %p292 = scmp.lt.s32.totalorder %s21, 4
      %p293 = pnand %p291, %p292
      %p294 = pneg %p293
      // Predicated region
      $region9: #{tpu_custom_call.1} parent=5 // pred_check
        _
      $region10: #{tpu_custom_call.1} parent=5 // pred_check_branch
        %296 = sbr.rel (%p293) target = $region12
      $region11: #{tpu_custom_call.1} parent=5 // pred_region
        %s297 = ssub.s32 %s21, 1
        // Predicated region
        $region13: #{tpu_custom_call.1} parent=11 // pred_check
          %p298 = pneg %p68
        $region14: #{tpu_custom_call.1} parent=11 // pred_check_branch
          %300 = sbr.rel (%p298) target = $region16
        $region15: #{tpu_custom_call.1} parent=11 // pred_region
          _
        $region16: #{tpu_custom_call.1} parent=11 // pred_fallthru
          _
        // Predicated region
        $region17: #{tpu_custom_call.1} parent=11 // pred_check
          %p301 = pneg %p89
        $region18: #{tpu_custom_call.1} parent=11 // pred_check_branch
          %303 = sbr.rel (%p301) target = $region20
        $region19: #{tpu_custom_call.1} parent=11 // pred_region
          _
        $region20: #{tpu_custom_call.1} parent=11 // pred_fallthru
          _
        // Predicated region
        $region21: #{tpu_custom_call.1} parent=11 // pred_check
          %p304 = pneg %p110
        $region22: #{tpu_custom_call.1} parent=11 // pred_check_branch
          %306 = sbr.rel (%p304) target = $region24
        $region23: #{tpu_custom_call.1} parent=11 // pred_region
          _
        $region24: #{tpu_custom_call.1} parent=11 // pred_fallthru
          _
        // Predicated region
        $region25: #{tpu_custom_call.1} parent=11 // pred_check
          %p307 = pneg %p131
        $region26: #{tpu_custom_call.1} parent=11 // pred_check_branch
          %309 = sbr.rel (%p307) target = $region28
        $region27: #{tpu_custom_call.1} parent=11 // pred_region
          _
        $region28: #{tpu_custom_call.1} parent=11 // pred_fallthru
          _
        // Predicated region
        $region29: #{tpu_custom_call.1} parent=11 // pred_check
          %p310 = pneg %p152
        $region30: #{tpu_custom_call.1} parent=11 // pred_check_branch
          %312 = sbr.rel (%p310) target = $region32
        $region31: #{tpu_custom_call.1} parent=11 // pred_region
          _
        $region32: #{tpu_custom_call.1} parent=11 // pred_fallthru
          _
        // Predicated region
        $region33: #{tpu_custom_call.1} parent=11 // pred_check
          %p313 = pneg %p173
        $region34: #{tpu_custom_call.1} parent=11 // pred_check_branch
          %315 = sbr.rel (%p313) target = $region36
        $region35: #{tpu_custom_call.1} parent=11 // pred_region
          _
        $region36: #{tpu_custom_call.1} parent=11 // pred_fallthru
          _
        // Predicated region
        $region37: #{tpu_custom_call.1} parent=11 // pred_check
          %p316 = pneg %p194
        $region38: #{tpu_custom_call.1} parent=11 // pred_check_branch
          %318 = sbr.rel (%p316) target = $region40
        $region39: #{tpu_custom_call.1} parent=11 // pred_region
          _
        $region40: #{tpu_custom_call.1} parent=11 // pred_fallthru
          _
        // Predicated region
        $region41: #{tpu_custom_call.1} parent=11 // pred_check
          %p319 = pneg %p215
        $region42: #{tpu_custom_call.1} parent=11 // pred_check_branch
          %321 = sbr.rel (%p319) target = $region44
        $region43: #{tpu_custom_call.1} parent=11 // pred_region
          _
        $region44: #{tpu_custom_call.1} parent=11 // pred_fallthru
          _
        // Predicated region
        $region45: #{tpu_custom_call.1} parent=11 // pred_check
          %p322 = pneg %p236
        $region46: #{tpu_custom_call.1} parent=11 // pred_check_branch
          %324 = sbr.rel (%p322) target = $region48
        $region47: #{tpu_custom_call.1} parent=11 // pred_region
          %s326 = ssub.s32 2048, 2048
          %327 = vsyncadd [#allocation3], %s326
          %s328 = sshll.u32 [#allocation2], 4
          %s329 = int_to_ptr.vmem [resolvable:$true] %s328
          %334 = dma.hbm_to_vmem [thread:$0]  %s9, 2048, %s329, [#allocation3], 128, 128, 8
        $region48: #{tpu_custom_call.1} parent=11 // pred_fallthru
          _
        // Predicated region
        $region49: #{tpu_custom_call.1} parent=11 // pred_check
          %p335 = pneg %p257
        $region50: #{tpu_custom_call.1} parent=11 // pred_check_branch
          %337 = sbr.rel (%p335) target = $region52
        $region51: #{tpu_custom_call.1} parent=11 // pred_region
          _
        $region52: #{tpu_custom_call.1} parent=11 // pred_fallthru
          _
      $region12: #{tpu_custom_call.1} parent=5 // pred_fallthru
        _
      %p338 = scmp.lt.s32.totalorder %s21, 3
      // Predicated region
      $region53: #{tpu_custom_call.1} parent=5 // pred_check
        %p339 = pneg %p338
      $region54: #{tpu_custom_call.1} parent=5 // pred_check_branch
        %341 = sbr.rel (%p339) target = $region56
      $region55: #{tpu_custom_call.1} parent=5 // pred_region
        // Predicated region
        $region57: #{tpu_custom_call.1} parent=55 // pred_check
          %p342 = pneg %p41
        $region58: #{tpu_custom_call.1} parent=55 // pred_check_branch
          %344 = sbr.rel (%p342) target = $region60
        $region59: #{tpu_custom_call.1} parent=55 // pred_region
          %s345 = smul.u32 16, %s21
          %p346 = scmp.lt.s32.totalorder %s345, 47
          %s347 = scalar_select %p346, %s345, 47
          %s348 = smul.addr %s347, 8
          %s349 = scalar_lea.vmem %s0, %s348
          %s350 = smul.u32 16, %s21
        $region60: #{tpu_custom_call.1} parent=55 // pred_fallthru
          _
      $region56: #{tpu_custom_call.1} parent=5 // pred_fallthru
        _
      %p351 = scmp.le.s32.totalorder 1, %s21
      %p352 = scmp.lt.s32.totalorder %s21, 4
      %p353 = pnand %p351, %p352
      %p354 = pneg %p353
      // Predicated region
      $region61: #{tpu_custom_call.1} parent=5 // pred_check
        _
      $region62: #{tpu_custom_call.1} parent=5 // pred_check_branch
        %356 = sbr.rel (%p353) target = $region64
      $region63: #{tpu_custom_call.1} parent=5 // pred_region
        %s357 = ssub.s32 %s21, 1
        // Predicated region
        $region65: #{tpu_custom_call.1} parent=63 // pred_check
          %p358 = pneg %p236
        $region66: #{tpu_custom_call.1} parent=63 // pred_check_branch
          %360 = sbr.rel (%p358) target = $region68
        $region67: #{tpu_custom_call.1} parent=63 // pred_region
          %361 = dma.done [#allocation3], 2048
        $region68: #{tpu_custom_call.1} parent=63 // pred_fallthru
          _
        %s362 = smul.u32 16, %s26
        %p363 = scmp.lt.s32.totalorder %s362, 47
        %s364 = scalar_select %p363, %s362, 47
        %s365 = smul.addr %s364, 8
        %s366 = scalar_lea.vmem %s0, %s365
        %p367 = pneg %p47
        %p368 = pneg %p44
        %p369 = pneg %p68
        %p370 = pneg %p65
        %p371 = pneg %p89
        %p372 = pneg %p86
        %p373 = pneg %p110
        %p374 = pneg %p107
        %p375 = pneg %p131
        %p376 = pneg %p128
        %p377 = pneg %p152
        %p378 = pneg %p149
        %p379 = pneg %p173
        %p380 = pneg %p170
        %p381 = pneg %p194
        %p382 = pneg %p191
        %p383 = pneg %p215
        %p384 = pneg %p212
        %p385 = pneg %p236
        %p386 = pneg %p233
        %p387 = pneg %p257
        %p388 = pneg %p254
        %p389 = pneg %p283
        %p390 = pneg %p280
        %s391 = sand.u32 %s270, 1
        %s392 = scalar_lea.sflag [#allocation4], %s391
        %s393 = sand.u32 %s270, 1
        %s394 = smul.addr %s393, 128
        %s395 = scalar_lea.vmem [#allocation5], %s394
        %s396 = smul.u32 16, %s26
        %p397 = scmp.lt.s32.totalorder %s396, 47
        %s398 = scalar_select %p397, %s396, 47
        %s399 = smul.addr %s398, 8
        %s400 = scalar_lea.vmem %s0, %s399
        %s401 = smul.u32 16, %s26
        %s402 = smul.u32 16, %s26
        %v403 = vld [vmem:[%s400] sm:$0xff]
        %v404 = vld [vmem:[%s400 + $0x8] sm:$0xff]
        %v405 = vld [vmem:[%s400 + $0x10] sm:$0xff]
        %v406 = vld [vmem:[%s400 + $0x18] sm:$0xff]
        %v407 = vld [vmem:[%s400 + $0x20] sm:$0xff]
        %v408 = vld [vmem:[%s400 + $0x28] sm:$0xff]
        %v409 = vld [vmem:[%s400 + $0x30] sm:$0xff]
        %v410 = vld [vmem:[%s400 + $0x38] sm:$0xff]
        %v411 = vld [vmem:[%s400 + $0x40] sm:$0xff]
        %v412 = vld [vmem:[%s400 + $0x48] sm:$0xff]
        %v413 = vld [vmem:[%s400 + $0x50] sm:$0xff]
        %v414 = vld [vmem:[%s400 + $0x58] sm:$0xff]
        %v415 = vld [vmem:[%s400 + $0x60] sm:$0xff]
        %v416 = vld [vmem:[%s400 + $0x68] sm:$0xff]
        %v417 = vld [vmem:[%s400 + $0x70] sm:$0xff]
        %v418 = vld [vmem:[%s400 + $0x78] sm:$0xff]
        %v419 = vld [vmem:[%s1] sm:$0xff]
        %v420 = vld [vmem:[%s1 + $0x8] sm:$0xff]
        %v421 = vld [vmem:[%s2] sm:$0x1]
        %v423 = vlaneseq
        %v424 = vshrl.u32 %v423, 7
        %v425 = vsub.s32 0, %v424
        %v426 = vrot.slane %v421, %v425
        %vm428 = vcmask 130048
        %v430 = vsel %vm428, %v403, 0
        %v433 = vsel %vm428, %v404, 0
        %v436 = vsel %vm428, %v405, 0
        %v439 = vsel %vm428, %v406, 0
        %v442 = vsel %vm428, %v407, 0
        %v445 = vsel %vm428, %v408, 0
        %v448 = vsel %vm428, %v409, 0
        %v451 = vsel %vm428, %v410, 0
        %v454 = vsel %vm428, %v411, 0
        %v457 = vsel %vm428, %v412, 0
        %v460 = vsel %vm428, %v413, 0
        %v463 = vsel %vm428, %v414, 0
        %v466 = vsel %vm428, %v415, 0
        %v469 = vsel %vm428, %v416, 0
        %v472 = vsel %vm428, %v417, 0
        %v475 = vsel %vm428, %v418, 0
        %477 = vmatprep.subr.mxu0 0.0
        %478 = vmatpush1.msra.mxu0 %v419
        %479 = vmatprep.subr.mxu0 0.0
        %480 = vmatpush1.msra.mxu0 %v420
        %481 = vmatprep.subr.mxu0 0.0
        %482 = vmatpush1.msra.mxu0 0.0
        %483 = vmatprep.subr.mxu0 0.0
        %484 = vmatpush1.msra.mxu0 0.0
        %485 = vmatprep.subr.mxu0 0.0
        %486 = vmatpush1.msra.mxu0 0.0
        %487 = vmatprep.subr.mxu0 0.0
        %488 = vmatpush1.msra.mxu0 0.0
        %489 = vmatprep.subr.mxu0 0.0
        %490 = vmatpush1.msra.mxu0 0.0
        %491 = vmatprep.subr.mxu0 0.0
        %492 = vmatpush1.msra.mxu0 0.0
        %493 = vmatprep.subr.mxu0 0.0
        %494 = vmatpush1.msra.mxu0 0.0
        %495 = vmatprep.subr.mxu0 0.0
        %496 = vmatpush1.msra.mxu0 0.0
        %497 = vmatprep.subr.mxu0 0.0
        %498 = vmatpush1.msra.mxu0 0.0
        %499 = vmatprep.subr.mxu0 0.0
        %500 = vmatpush1.msra.mxu0 0.0
        %501 = vmatprep.subr.mxu0 0.0
        %502 = vmatpush1.msra.mxu0 0.0
        %503 = vmatprep.subr.mxu0 0.0
        %504 = vmatpush1.msra.mxu0 0.0
        %505 = vmatprep.subr.mxu0 0.0
        %506 = vmatpush1.msra.mxu0 0.0
        %507 = vmatprep.subr.mxu0 0.0
        %508 = vmatpush1.msra.mxu0 0.0
        %509 = vmatprep.subr.mxu0 0.0
        %510 = vmatpush1.msra.mxu0 0.0
        %511 = vmatprep.subr.mxu0 0.0
        %512 = vmatpush1.msra.mxu0 0.0
        %513 = vmatprep.subr.mxu0 0.0
        %514 = vmatpush1.msra.mxu0 0.0
        %515 = vmatprep.subr.mxu0 0.0
        %516 = vmatpush1.msra.mxu0 0.0
        %517 = vmatprep.subr.mxu0 0.0
        %518 = vmatpush1.msra.mxu0 0.0
        %519 = vmatprep.subr.mxu0 0.0
        %520 = vmatpush1.msra.mxu0 0.0
        %521 = vmatprep.subr.mxu0 0.0
        %522 = vmatpush1.msra.mxu0 0.0
        %523 = vmatprep.subr.mxu0 0.0
        %524 = vmatpush1.msra.mxu0 0.0
        %525 = vmatprep.subr.mxu0 0.0
        %526 = vmatpush1.msra.mxu0 0.0
        %527 = vmatprep.subr.mxu0 0.0
        %528 = vmatpush1.msra.mxu0 0.0
        %529 = vmatprep.subr.mxu0 0.0
        %530 = vmatpush1.msra.mxu0 0.0
        %531 = vmatprep.subr.mxu0 0.0
        %532 = vmatpush1.msra.mxu0 0.0
        %533 = vmatprep.subr.mxu0 0.0
        %534 = vmatpush1.msra.mxu0 0.0
        %535 = vmatprep.subr.mxu0 0.0
        %536 = vmatpush1.msra.mxu0 0.0
        %537 = vmatprep.subr.mxu0 0.0
        %538 = vmatpush1.msra.mxu0 0.0
        %539 = vmatprep.subr.mxu0 0.0
        %540 = vmatpush1.msra.mxu0 0.0
        %541 = vmatprep.mubr.f32.mxu0 0.0
        %542 = vmatmul.mubr.f32.gmra.mrb[0].mxu0 %v430
        %v543 = vpop.f32.mrb[0].mxu0
        %v544 = vadd.f32 %v426, %v543
        %v545 = vpop.f32.mrb[0].mxu0
        %546 = vmatprep.mubr.f32.mxu0 0.0
        %547 = vmatmul.mubr.f32.gmra.mrb[0].mxu0 %v433
        %v548 = vpop.f32.mrb[0].mxu0
        %v549 = vadd.f32 %v426, %v548
        %v550 = vpop.f32.mrb[0].mxu0
        %551 = vmatprep.mubr.f32.mxu0 0.0
        %552 = vmatmul.mubr.f32.gmra.mrb[0].mxu0 %v436
        %v553 = vpop.f32.mrb[0].mxu0
        %v554 = vadd.f32 %v426, %v553
        %v555 = vpop.f32.mrb[0].mxu0
        %556 = vmatprep.mubr.f32.mxu0 0.0
        %557 = vmatmul.mubr.f32.gmra.mrb[0].mxu0 %v439
        %v558 = vpop.f32.mrb[0].mxu0
        %v559 = vadd.f32 %v426, %v558
        %v560 = vpop.f32.mrb[0].mxu0
        %561 = vmatprep.mubr.f32.mxu0 0.0
        %562 = vmatmul.mubr.f32.gmra.mrb[0].mxu0 %v442
        %v563 = vpop.f32.mrb[0].mxu0
        %v564 = vadd.f32 %v426, %v563
        %v565 = vpop.f32.mrb[0].mxu0
        %566 = vmatprep.mubr.f32.mxu0 0.0
        %567 = vmatmul.mubr.f32.gmra.mrb[0].mxu0 %v445
        %v568 = vpop.f32.mrb[0].mxu0
        %v569 = vadd.f32 %v426, %v568
        %v570 = vpop.f32.mrb[0].mxu0
        %571 = vmatprep.mubr.f32.mxu0 0.0
        %572 = vmatmul.mubr.f32.gmra.mrb[0].mxu0 %v448
        %v573 = vpop.f32.mrb[0].mxu0
        %v574 = vadd.f32 %v426, %v573
        %v575 = vpop.f32.mrb[0].mxu0
        %576 = vmatprep.mubr.f32.mxu0 0.0
        %577 = vmatmul.mubr.f32.gmra.mrb[0].mxu0 %v451
        %v578 = vpop.f32.mrb[0].mxu0
        %v579 = vadd.f32 %v426, %v578
        %v580 = vpop.f32.mrb[0].mxu0
        %581 = vmatprep.mubr.f32.mxu0 0.0
        %582 = vmatmul.mubr.f32.gmra.mrb[0].mxu0 %v454
        %v583 = vpop.f32.mrb[0].mxu0
        %v584 = vadd.f32 %v426, %v583
        %v585 = vpop.f32.mrb[0].mxu0
        %586 = vmatprep.mubr.f32.mxu0 0.0
        %587 = vmatmul.mubr.f32.gmra.mrb[0].mxu0 %v457
        %v588 = vpop.f32.mrb[0].mxu0
        %v589 = vadd.f32 %v426, %v588
        %v590 = vpop.f32.mrb[0].mxu0
        %591 = vmatprep.mubr.f32.mxu0 0.0
        %592 = vmatmul.mubr.f32.gmra.mrb[0].mxu0 %v460
        %v593 = vpop.f32.mrb[0].mxu0
        %v594 = vadd.f32 %v426, %v593
        %v595 = vpop.f32.mrb[0].mxu0
        %596 = vmatprep.mubr.f32.mxu0 0.0
        %597 = vmatmul.mubr.f32.gmra.mrb[0].mxu0 %v463
        %v598 = vpop.f32.mrb[0].mxu0
        %v599 = vadd.f32 %v426, %v598
        %v600 = vpop.f32.mrb[0].mxu0
        %601 = vmatprep.mubr.f32.mxu0 0.0
        %602 = vmatmul.mubr.f32.gmra.mrb[0].mxu0 %v466
        %v603 = vpop.f32.mrb[0].mxu0
        %v604 = vadd.f32 %v426, %v603
        %v605 = vpop.f32.mrb[0].mxu0
        %606 = vmatprep.mubr.f32.mxu0 0.0
        %607 = vmatmul.mubr.f32.gmra.mrb[0].mxu0 %v469
        %v608 = vpop.f32.mrb[0].mxu0
        %v609 = vadd.f32 %v426, %v608
        %v610 = vpop.f32.mrb[0].mxu0
        %611 = vmatprep.mubr.f32.mxu0 0.0
        %612 = vmatmul.mubr.f32.gmra.mrb[0].mxu0 %v472
        %v613 = vpop.f32.mrb[0].mxu0
        %v614 = vadd.f32 %v426, %v613
        %v615 = vpop.f32.mrb[0].mxu0
        %616 = vmatprep.mubr.f32.mxu0 0.0
        %617 = vmatmul.mubr.f32.gmra.mrb[0].mxu0 %v475
        %v618 = vpop.f32.mrb[0].mxu0
        %v619 = vadd.f32 %v426, %v618
        %v620 = vpop.f32.mrb[0].mxu0
        %621 = vdwg.mxu0
        %vm622 = vcmp.gt.f32.partialorder %v544, 0.0
        %vm623 = vcmp.gt.f32.partialorder %v549, 0.0
        %vm624 = vcmp.gt.f32.partialorder %v554, 0.0
        %vm625 = vcmp.gt.f32.partialorder %v559, 0.0
        %vm626 = vcmp.gt.f32.partialorder %v564, 0.0
        %vm627 = vcmp.gt.f32.partialorder %v569, 0.0
        %vm628 = vcmp.gt.f32.partialorder %v574, 0.0
        %vm629 = vcmp.gt.f32.partialorder %v579, 0.0
        %vm630 = vcmp.gt.f32.partialorder %v584, 0.0
        %vm631 = vcmp.gt.f32.partialorder %v589, 0.0
        %vm632 = vcmp.gt.f32.partialorder %v594, 0.0
        %vm633 = vcmp.gt.f32.partialorder %v599, 0.0
        %vm634 = vcmp.gt.f32.partialorder %v604, 0.0
        %vm635 = vcmp.gt.f32.partialorder %v609, 0.0
        %vm636 = vcmp.gt.f32.partialorder %v614, 0.0
        %vm637 = vcmp.gt.f32.partialorder %v619, 0.0
        %v638 = vmul.f32 %v544, 1.442695
        %v639 = vpow.pop %v638
        %v640 = vmul.f32 %v549, 1.442695
        %v641 = vpow.pop %v640
        %v642 = vmul.f32 %v554, 1.442695
        %v643 = vpow.pop %v642
        %v644 = vmul.f32 %v559, 1.442695
        %v645 = vpow.pop %v644
        %v646 = vmul.f32 %v564, 1.442695
        %v647 = vpow.pop %v646
        %v648 = vmul.f32 %v569, 1.442695
        %v649 = vpow.pop %v648
        %v650 = vmul.f32 %v574, 1.442695
        %v651 = vpow.pop %v650
        %v652 = vmul.f32 %v579, 1.442695
        %v653 = vpow.pop %v652
        %v654 = vmul.f32 %v584, 1.442695
        %v655 = vpow.pop %v654
        %v656 = vmul.f32 %v589, 1.442695
        %v657 = vpow.pop %v656
        %v658 = vmul.f32 %v594, 1.442695
        %v659 = vpow.pop %v658
        %v660 = vmul.f32 %v599, 1.442695
        %v661 = vpow.pop %v660
        %v662 = vmul.f32 %v604, 1.442695
        %v663 = vpow.pop %v662
        %v664 = vmul.f32 %v609, 1.442695
        %v665 = vpow.pop %v664
        %v666 = vmul.f32 %v614, 1.442695
        %v667 = vpow.pop %v666
        %v668 = vmul.f32 %v619, 1.442695
        %v669 = vpow.pop %v668
        %v670 = vsub.f32 %v639, 1.0
        %v671 = vsub.f32 %v641, 1.0
        %v672 = vsub.f32 %v643, 1.0
        %v673 = vsub.f32 %v645, 1.0
        %v674 = vsub.f32 %v647, 1.0
        %v675 = vsub.f32 %v649, 1.0
        %v676 = vsub.f32 %v651, 1.0
        %v677 = vsub.f32 %v653, 1.0
        %v678 = vsub.f32 %v655, 1.0
        %v679 = vsub.f32 %v657, 1.0
        %v680 = vsub.f32 %v659, 1.0
        %v681 = vsub.f32 %v661, 1.0
        %v682 = vsub.f32 %v663, 1.0
        %v683 = vsub.f32 %v665, 1.0
        %v684 = vsub.f32 %v667, 1.0
        %v685 = vsub.f32 %v669, 1.0
        %v686 = vsel %vm622, %v544, %v670
        %v687 = vsel %vm623, %v549, %v671
        %v688 = vsel %vm624, %v554, %v672
        %v689 = vsel %vm625, %v559, %v673
        %v690 = vsel %vm626, %v564, %v674
        %v691 = vsel %vm627, %v569, %v675
        %v692 = vsel %vm628, %v574, %v676
        %v693 = vsel %vm629, %v579, %v677
        %v694 = vsel %vm630, %v584, %v678
        %v695 = vsel %vm631, %v589, %v679
        %v696 = vsel %vm632, %v594, %v680
        %v697 = vsel %vm633, %v599, %v681
        %v698 = vsel %vm634, %v604, %v682
        %v699 = vsel %vm635, %v609, %v683
        %v700 = vsel %vm636, %v614, %v684
        %v701 = vsel %vm637, %v619, %v685
        %v702 = vld [vmem:[%s3] sm:$0xff]
        %v703 = vld [vmem:[%s3 + $0x8] sm:$0xff]
        %v704 = vld [vmem:[%s3 + $0x10] sm:$0xff]
        %v705 = vld [vmem:[%s3 + $0x18] sm:$0xff]
        %v706 = vld [vmem:[%s3 + $0x20] sm:$0xff]
        %v707 = vld [vmem:[%s3 + $0x28] sm:$0xff]
        %v708 = vld [vmem:[%s3 + $0x30] sm:$0xff]
        %v709 = vld [vmem:[%s3 + $0x38] sm:$0xff]
        %v710 = vld [vmem:[%s3 + $0x40] sm:$0xff]
        %v711 = vld [vmem:[%s3 + $0x48] sm:$0xff]
        %v712 = vld [vmem:[%s3 + $0x50] sm:$0xff]
        %v713 = vld [vmem:[%s3 + $0x58] sm:$0xff]
        %v714 = vld [vmem:[%s3 + $0x60] sm:$0xff]
        %v715 = vld [vmem:[%s3 + $0x68] sm:$0xff]
        %v716 = vld [vmem:[%s3 + $0x70] sm:$0xff]
        %v717 = vld [vmem:[%s3 + $0x78] sm:$0xff]
        %v718 = vld [vmem:[%s4] sm:$0x1]
        %v720 = vlaneseq
        %v721 = vshrl.u32 %v720, 7
        %v722 = vsub.s32 0, %v721
        %v723 = vrot.slane %v718, %v722
        %725 = vmatprep.subr.mxu0 0.0
        %726 = vmatpush1.msra.mxu0 %v702
        %727 = vmatprep.subr.mxu0 0.0
        %728 = vmatpush1.msra.mxu0 %v703
        %729 = vmatprep.subr.mxu0 0.0
        %730 = vmatpush1.msra.mxu0 %v704
        %731 = vmatprep.subr.mxu0 0.0
        %732 = vmatpush1.msra.mxu0 %v705
        %733 = vmatprep.subr.mxu0 0.0
        %734 = vmatpush1.msra.mxu0 %v706
        %735 = vmatprep.subr.mxu0 0.0
        %736 = vmatpush1.msra.mxu0 %v707
        %737 = vmatprep.subr.mxu0 0.0
        %738 = vmatpush1.msra.mxu0 %v708
        %739 = vmatprep.subr.mxu0 0.0
        %740 = vmatpush1.msra.mxu0 %v709
        %741 = vmatprep.subr.mxu0 0.0
        %742 = vmatpush1.msra.mxu0 %v710
        %743 = vmatprep.subr.mxu0 0.0
        %744 = vmatpush1.msra.mxu0 %v711
        %745 = vmatprep.subr.mxu0 0.0
        %746 = vmatpush1.msra.mxu0 %v712
        %747 = vmatprep.subr.mxu0 0.0
        %748 = vmatpush1.msra.mxu0 %v713
        %749 = vmatprep.subr.mxu0 0.0
        %750 = vmatpush1.msra.mxu0 %v714
        %751 = vmatprep.subr.mxu0 0.0
        %752 = vmatpush1.msra.mxu0 %v715
        %753 = vmatprep.subr.mxu0 0.0
        %754 = vmatpush1.msra.mxu0 %v716
        %755 = vmatprep.subr.mxu0 0.0
        %756 = vmatpush1.msra.mxu0 %v717
        %757 = vmatprep.subr.mxu0 0.0
        %758 = vmatpush1.msra.mxu0 0.0
        %759 = vmatprep.subr.mxu0 0.0
        %760 = vmatpush1.msra.mxu0 0.0
        %761 = vmatprep.subr.mxu0 0.0
        %762 = vmatpush1.msra.mxu0 0.0
        %763 = vmatprep.subr.mxu0 0.0
        %764 = vmatpush1.msra.mxu0 0.0
        %765 = vmatprep.subr.mxu0 0.0
        %766 = vmatpush1.msra.mxu0 0.0
        %767 = vmatprep.subr.mxu0 0.0
        %768 = vmatpush1.msra.mxu0 0.0
        %769 = vmatprep.subr.mxu0 0.0
        %770 = vmatpush1.msra.mxu0 0.0
        %771 = vmatprep.subr.mxu0 0.0
        %772 = vmatpush1.msra.mxu0 0.0
        %773 = vmatprep.subr.mxu0 0.0
        %774 = vmatpush1.msra.mxu0 0.0
        %775 = vmatprep.subr.mxu0 0.0
        %776 = vmatpush1.msra.mxu0 0.0
        %777 = vmatprep.subr.mxu0 0.0
        %778 = vmatpush1.msra.mxu0 0.0
        %779 = vmatprep.subr.mxu0 0.0
        %780 = vmatpush1.msra.mxu0 0.0
        %781 = vmatprep.subr.mxu0 0.0
        %782 = vmatpush1.msra.mxu0 0.0
        %783 = vmatprep.subr.mxu0 0.0
        %784 = vmatpush1.msra.mxu0 0.0
        %785 = vmatprep.subr.mxu0 0.0
        %786 = vmatpush1.msra.mxu0 0.0
        %787 = vmatprep.subr.mxu0 0.0
        %788 = vmatpush1.msra.mxu0 0.0
        %789 = vmatprep.mubr.f32.mxu0 0.0
        %790 = vmatmul.mubr.f32.gmra.mrb[0].mxu0 %v686
        %v791 = vpop.f32.mrb[0].mxu0
        %v792 = vadd.f32 %v723, %v791
        %v793 = vpop.f32.mrb[0].mxu0
        %794 = vmatprep.mubr.f32.mxu0 0.0
        %795 = vmatmul.mubr.f32.gmra.mrb[0].mxu0 %v687
        %v796 = vpop.f32.mrb[0].mxu0
        %v797 = vadd.f32 %v723, %v796
        %v798 = vpop.f32.mrb[0].mxu0
        %799 = vmatprep.mubr.f32.mxu0 0.0
        %800 = vmatmul.mubr.f32.gmra.mrb[0].mxu0 %v688
        %v801 = vpop.f32.mrb[0].mxu0
        %v802 = vadd.f32 %v723, %v801
        %v803 = vpop.f32.mrb[0].mxu0
        %804 = vmatprep.mubr.f32.mxu0 0.0
        %805 = vmatmul.mubr.f32.gmra.mrb[0].mxu0 %v689
        %v806 = vpop.f32.mrb[0].mxu0
        %v807 = vadd.f32 %v723, %v806
        %v808 = vpop.f32.mrb[0].mxu0
        %809 = vmatprep.mubr.f32.mxu0 0.0
        %810 = vmatmul.mubr.f32.gmra.mrb[0].mxu0 %v690
        %v811 = vpop.f32.mrb[0].mxu0
        %v812 = vadd.f32 %v723, %v811
        %v813 = vpop.f32.mrb[0].mxu0
        %814 = vmatprep.mubr.f32.mxu0 0.0
        %815 = vmatmul.mubr.f32.gmra.mrb[0].mxu0 %v691
        %v816 = vpop.f32.mrb[0].mxu0
        %v817 = vadd.f32 %v723, %v816
        %v818 = vpop.f32.mrb[0].mxu0
        %819 = vmatprep.mubr.f32.mxu0 0.0
        %820 = vmatmul.mubr.f32.gmra.mrb[0].mxu0 %v692
        %v821 = vpop.f32.mrb[0].mxu0
        %v822 = vadd.f32 %v723, %v821
        %v823 = vpop.f32.mrb[0].mxu0
        %824 = vmatprep.mubr.f32.mxu0 0.0
        %825 = vmatmul.mubr.f32.gmra.mrb[0].mxu0 %v693
        %v826 = vpop.f32.mrb[0].mxu0
        %v827 = vadd.f32 %v723, %v826
        %v828 = vpop.f32.mrb[0].mxu0
        %829 = vmatprep.mubr.f32.mxu0 0.0
        %830 = vmatmul.mubr.f32.gmra.mrb[0].mxu0 %v694
        %v831 = vpop.f32.mrb[0].mxu0
        %v832 = vadd.f32 %v723, %v831
        %v833 = vpop.f32.mrb[0].mxu0
        %834 = vmatprep.mubr.f32.mxu0 0.0
        %835 = vmatmul.mubr.f32.gmra.mrb[0].mxu0 %v695
        %v836 = vpop.f32.mrb[0].mxu0
        %v837 = vadd.f32 %v723, %v836
        %v838 = vpop.f32.mrb[0].mxu0
        %839 = vmatprep.mubr.f32.mxu0 0.0
        %840 = vmatmul.mubr.f32.gmra.mrb[0].mxu0 %v696
        %v841 = vpop.f32.mrb[0].mxu0
        %v842 = vadd.f32 %v723, %v841
        %v843 = vpop.f32.mrb[0].mxu0
        %844 = vmatprep.mubr.f32.mxu0 0.0
        %845 = vmatmul.mubr.f32.gmra.mrb[0].mxu0 %v697
        %v846 = vpop.f32.mrb[0].mxu0
        %v847 = vadd.f32 %v723, %v846
        %v848 = vpop.f32.mrb[0].mxu0
        %849 = vmatprep.mubr.f32.mxu0 0.0
        %850 = vmatmul.mubr.f32.gmra.mrb[0].mxu0 %v698
        %v851 = vpop.f32.mrb[0].mxu0
        %v852 = vadd.f32 %v723, %v851
        %v853 = vpop.f32.mrb[0].mxu0
        %854 = vmatprep.mubr.f32.mxu0 0.0
        %855 = vmatmul.mubr.f32.gmra.mrb[0].mxu0 %v699
        %v856 = vpop.f32.mrb[0].mxu0
        %v857 = vadd.f32 %v723, %v856
        %v858 = vpop.f32.mrb[0].mxu0
        %859 = vmatprep.mubr.f32.mxu0 0.0
        %860 = vmatmul.mubr.f32.gmra.mrb[0].mxu0 %v700
        %v861 = vpop.f32.mrb[0].mxu0
        %v862 = vadd.f32 %v723, %v861
        %v863 = vpop.f32.mrb[0].mxu0
        %864 = vmatprep.mubr.f32.mxu0 0.0
        %865 = vmatmul.mubr.f32.gmra.mrb[0].mxu0 %v701
        %v866 = vpop.f32.mrb[0].mxu0
        %v867 = vadd.f32 %v723, %v866
        %v868 = vpop.f32.mrb[0].mxu0
        %869 = vdwg.mxu0
        %v870 = vsub.f32 0.0, %v792
        %v871 = vsub.f32 0.0, %v797
        %v872 = vsub.f32 0.0, %v802
        %v873 = vsub.f32 0.0, %v807
        %v874 = vsub.f32 0.0, %v812
        %v875 = vsub.f32 0.0, %v817
        %v876 = vsub.f32 0.0, %v822
        %v877 = vsub.f32 0.0, %v827
        %v878 = vsub.f32 0.0, %v832
        %v879 = vsub.f32 0.0, %v837
        %v880 = vsub.f32 0.0, %v842
        %v881 = vsub.f32 0.0, %v847
        %v882 = vsub.f32 0.0, %v852
        %v883 = vsub.f32 0.0, %v857
        %v884 = vsub.f32 0.0, %v862
        %v885 = vsub.f32 0.0, %v867
        %v886 = vmul.f32 %v870, 1.442695
        %v887 = vpow.pop %v886
        %v888 = vmul.f32 %v871, 1.442695
        %v889 = vpow.pop %v888
        %v890 = vmul.f32 %v872, 1.442695
        %v891 = vpow.pop %v890
        %v892 = vmul.f32 %v873, 1.442695
        %v893 = vpow.pop %v892
        %v894 = vmul.f32 %v874, 1.442695
        %v895 = vpow.pop %v894
        %v896 = vmul.f32 %v875, 1.442695
        %v897 = vpow.pop %v896
        %v898 = vmul.f32 %v876, 1.442695
        %v899 = vpow.pop %v898
        %v900 = vmul.f32 %v877, 1.442695
        %v901 = vpow.pop %v900
        %v902 = vmul.f32 %v878, 1.442695
        %v903 = vpow.pop %v902
        %v904 = vmul.f32 %v879, 1.442695
        %v905 = vpow.pop %v904
        %v906 = vmul.f32 %v880, 1.442695
        %v907 = vpow.pop %v906
        %v908 = vmul.f32 %v881, 1.442695
        %v909 = vpow.pop %v908
        %v910 = vmul.f32 %v882, 1.442695
        %v911 = vpow.pop %v910
        %v912 = vmul.f32 %v883, 1.442695
        %v913 = vpow.pop %v912
        %v914 = vmul.f32 %v884, 1.442695
        %v915 = vpow.pop %v914
        %v916 = vmul.f32 %v885, 1.442695
        %v917 = vpow.pop %v916
        %v918 = vadd.f32 %v887, 1.0
        %v919 = vadd.f32 %v889, 1.0
        %v920 = vadd.f32 %v891, 1.0
        %v921 = vadd.f32 %v893, 1.0
        %v922 = vadd.f32 %v895, 1.0
        %v923 = vadd.f32 %v897, 1.0
        %v924 = vadd.f32 %v899, 1.0
        %v925 = vadd.f32 %v901, 1.0
        %v926 = vadd.f32 %v903, 1.0
        %v927 = vadd.f32 %v905, 1.0
        %v928 = vadd.f32 %v907, 1.0
        %v929 = vadd.f32 %v909, 1.0
        %v930 = vadd.f32 %v911, 1.0
        %v931 = vadd.f32 %v913, 1.0
        %v932 = vadd.f32 %v915, 1.0
        %v933 = vadd.f32 %v917, 1.0
        %v934 = vrcp.pop %v918
        %v935 = vrcp.pop %v919
        %v936 = vrcp.pop %v920
        %v937 = vrcp.pop %v921
        %v938 = vrcp.pop %v922
        %v939 = vrcp.pop %v923
        %v940 = vrcp.pop %v924
        %v941 = vrcp.pop %v925
        %v942 = vrcp.pop %v926
        %v943 = vrcp.pop %v927
        %v944 = vrcp.pop %v928
        %v945 = vrcp.pop %v929
        %v946 = vrcp.pop %v930
        %v947 = vrcp.pop %v931
        %v948 = vrcp.pop %v932
        %v949 = vrcp.pop %v933
        %v950 = vmul.f32 %v792, %v934
        %v951 = vmul.f32 %v797, %v935
        %v952 = vmul.f32 %v802, %v936
        %v953 = vmul.f32 %v807, %v937
        %v954 = vmul.f32 %v812, %v938
        %v955 = vmul.f32 %v817, %v939
        %v956 = vmul.f32 %v822, %v940
        %v957 = vmul.f32 %v827, %v941
        %v958 = vmul.f32 %v832, %v942
        %v959 = vmul.f32 %v837, %v943
        %v960 = vmul.f32 %v842, %v944
        %v961 = vmul.f32 %v847, %v945
        %v962 = vmul.f32 %v852, %v946
        %v963 = vmul.f32 %v857, %v947
        %v964 = vmul.f32 %v862, %v948
        %v965 = vmul.f32 %v867, %v949
        %v966 = vld [vmem:[%s5] sm:$0xff]
        %v967 = vld [vmem:[%s5 + $0x8] sm:$0xff]
        %v968 = vld [vmem:[%s5 + $0x10] sm:$0xff]
        %v969 = vld [vmem:[%s5 + $0x18] sm:$0xff]
        %v970 = vld [vmem:[%s5 + $0x20] sm:$0xff]
        %v971 = vld [vmem:[%s5 + $0x28] sm:$0xff]
        %v972 = vld [vmem:[%s5 + $0x30] sm:$0xff]
        %v973 = vld [vmem:[%s5 + $0x38] sm:$0xff]
        %v974 = vld [vmem:[%s5 + $0x40] sm:$0xff]
        %v975 = vld [vmem:[%s5 + $0x48] sm:$0xff]
        %v976 = vld [vmem:[%s5 + $0x50] sm:$0xff]
        %v977 = vld [vmem:[%s5 + $0x58] sm:$0xff]
        %v978 = vld [vmem:[%s5 + $0x60] sm:$0xff]
        %v979 = vld [vmem:[%s5 + $0x68] sm:$0xff]
        %v980 = vld [vmem:[%s5 + $0x70] sm:$0xff]
        %v981 = vld [vmem:[%s5 + $0x78] sm:$0xff]
        %v982 = vld [vmem:[%s6] sm:$0x1]
        %v984 = vlaneseq
        %v985 = vshrl.u32 %v984, 7
        %v986 = vsub.s32 0, %v985
        %v987 = vrot.slane %v982, %v986
        %989 = vmatprep.subr.mxu0 0.0
        %990 = vmatpush1.msra.mxu0 %v966
        %991 = vmatprep.subr.mxu0 0.0
        %992 = vmatpush1.msra.mxu0 %v967
        %993 = vmatprep.subr.mxu0 0.0
        %994 = vmatpush1.msra.mxu0 %v968
        %995 = vmatprep.subr.mxu0 0.0
        %996 = vmatpush1.msra.mxu0 %v969
        %997 = vmatprep.subr.mxu0 0.0
        %998 = vmatpush1.msra.mxu0 %v970
        %999 = vmatprep.subr.mxu0 0.0
        %1000 = vmatpush1.msra.mxu0 %v971
        %1001 = vmatprep.subr.mxu0 0.0
        %1002 = vmatpush1.msra.mxu0 %v972
        %1003 = vmatprep.subr.mxu0 0.0
        %1004 = vmatpush1.msra.mxu0 %v973
        %1005 = vmatprep.subr.mxu0 0.0
        %1006 = vmatpush1.msra.mxu0 %v974
        %1007 = vmatprep.subr.mxu0 0.0
        %1008 = vmatpush1.msra.mxu0 %v975
        %1009 = vmatprep.subr.mxu0 0.0
        %1010 = vmatpush1.msra.mxu0 %v976
        %1011 = vmatprep.subr.mxu0 0.0
        %1012 = vmatpush1.msra.mxu0 %v977
        %1013 = vmatprep.subr.mxu0 0.0
        %1014 = vmatpush1.msra.mxu0 %v978
        %1015 = vmatprep.subr.mxu0 0.0
        %1016 = vmatpush1.msra.mxu0 %v979
        %1017 = vmatprep.subr.mxu0 0.0
        %1018 = vmatpush1.msra.mxu0 %v980
        %1019 = vmatprep.subr.mxu0 0.0
        %1020 = vmatpush1.msra.mxu0 %v981
        %1021 = vmatprep.subr.mxu0 0.0
        %1022 = vmatpush1.msra.mxu0 0.0
        %1023 = vmatprep.subr.mxu0 0.0
        %1024 = vmatpush1.msra.mxu0 0.0
        %1025 = vmatprep.subr.mxu0 0.0
        %1026 = vmatpush1.msra.mxu0 0.0
        %1027 = vmatprep.subr.mxu0 0.0
        %1028 = vmatpush1.msra.mxu0 0.0
        %1029 = vmatprep.subr.mxu0 0.0
        %1030 = vmatpush1.msra.mxu0 0.0
        %1031 = vmatprep.subr.mxu0 0.0
        %1032 = vmatpush1.msra.mxu0 0.0
        %1033 = vmatprep.subr.mxu0 0.0
        %1034 = vmatpush1.msra.mxu0 0.0
        %1035 = vmatprep.subr.mxu0 0.0
        %1036 = vmatpush1.msra.mxu0 0.0
        %1037 = vmatprep.subr.mxu0 0.0
        %1038 = vmatpush1.msra.mxu0 0.0
        %1039 = vmatprep.subr.mxu0 0.0
        %1040 = vmatpush1.msra.mxu0 0.0
        %1041 = vmatprep.subr.mxu0 0.0
        %1042 = vmatpush1.msra.mxu0 0.0
        %1043 = vmatprep.subr.mxu0 0.0
        %1044 = vmatpush1.msra.mxu0 0.0
        %1045 = vmatprep.subr.mxu0 0.0
        %1046 = vmatpush1.msra.mxu0 0.0
        %1047 = vmatprep.subr.mxu0 0.0
        %1048 = vmatpush1.msra.mxu0 0.0
        %1049 = vmatprep.subr.mxu0 0.0
        %1050 = vmatpush1.msra.mxu0 0.0
        %1051 = vmatprep.subr.mxu0 0.0
        %1052 = vmatpush1.msra.mxu0 0.0
        %1053 = vmatprep.mubr.f32.mxu0 0.0
        %1054 = vmatmul.mubr.f32.gmra.mrb[0].mxu0 %v950
        %v1055 = vpop.f32.mrb[0].mxu0
        %v1056 = vadd.f32 %v987, %v1055
        %v1057 = vpop.f32.mrb[0].mxu0
        %1058 = vmatprep.mubr.f32.mxu0 0.0
        %1059 = vmatmul.mubr.f32.gmra.mrb[0].mxu0 %v951
        %v1060 = vpop.f32.mrb[0].mxu0
        %v1061 = vadd.f32 %v987, %v1060
        %v1062 = vpop.f32.mrb[0].mxu0
        %1063 = vmatprep.mubr.f32.mxu0 0.0
        %1064 = vmatmul.mubr.f32.gmra.mrb[0].mxu0 %v952
        %v1065 = vpop.f32.mrb[0].mxu0
        %v1066 = vadd.f32 %v987, %v1065
        %v1067 = vpop.f32.mrb[0].mxu0
        %1068 = vmatprep.mubr.f32.mxu0 0.0
        %1069 = vmatmul.mubr.f32.gmra.mrb[0].mxu0 %v953
        %v1070 = vpop.f32.mrb[0].mxu0
        %v1071 = vadd.f32 %v987, %v1070
        %v1072 = vpop.f32.mrb[0].mxu0
        %1073 = vmatprep.mubr.f32.mxu0 0.0
        %1074 = vmatmul.mubr.f32.gmra.mrb[0].mxu0 %v954
        %v1075 = vpop.f32.mrb[0].mxu0
        %v1076 = vadd.f32 %v987, %v1075
        %v1077 = vpop.f32.mrb[0].mxu0
        %1078 = vmatprep.mubr.f32.mxu0 0.0
        %1079 = vmatmul.mubr.f32.gmra.mrb[0].mxu0 %v955
        %v1080 = vpop.f32.mrb[0].mxu0
        %v1081 = vadd.f32 %v987, %v1080
        %v1082 = vpop.f32.mrb[0].mxu0
        %1083 = vmatprep.mubr.f32.mxu0 0.0
        %1084 = vmatmul.mubr.f32.gmra.mrb[0].mxu0 %v956
        %v1085 = vpop.f32.mrb[0].mxu0
        %v1086 = vadd.f32 %v987, %v1085
        %v1087 = vpop.f32.mrb[0].mxu0
        %1088 = vmatprep.mubr.f32.mxu0 0.0
        %1089 = vmatmul.mubr.f32.gmra.mrb[0].mxu0 %v957
        %v1090 = vpop.f32.mrb[0].mxu0
        %v1091 = vadd.f32 %v987, %v1090
        %v1092 = vpop.f32.mrb[0].mxu0
        %1093 = vmatprep.mubr.f32.mxu0 0.0
        %1094 = vmatmul.mubr.f32.gmra.mrb[0].mxu0 %v958
        %v1095 = vpop.f32.mrb[0].mxu0
        %v1096 = vadd.f32 %v987, %v1095
        %v1097 = vpop.f32.mrb[0].mxu0
        %1098 = vmatprep.mubr.f32.mxu0 0.0
        %1099 = vmatmul.mubr.f32.gmra.mrb[0].mxu0 %v959
        %v1100 = vpop.f32.mrb[0].mxu0
        %v1101 = vadd.f32 %v987, %v1100
        %v1102 = vpop.f32.mrb[0].mxu0
        %1103 = vmatprep.mubr.f32.mxu0 0.0
        %1104 = vmatmul.mubr.f32.gmra.mrb[0].mxu0 %v960
        %v1105 = vpop.f32.mrb[0].mxu0
        %v1106 = vadd.f32 %v987, %v1105
        %v1107 = vpop.f32.mrb[0].mxu0
        %1108 = vmatprep.mubr.f32.mxu0 0.0
        %1109 = vmatmul.mubr.f32.gmra.mrb[0].mxu0 %v961
        %v1110 = vpop.f32.mrb[0].mxu0
        %v1111 = vadd.f32 %v987, %v1110
        %v1112 = vpop.f32.mrb[0].mxu0
        %1113 = vmatprep.mubr.f32.mxu0 0.0
        %1114 = vmatmul.mubr.f32.gmra.mrb[0].mxu0 %v962
        %v1115 = vpop.f32.mrb[0].mxu0
        %v1116 = vadd.f32 %v987, %v1115
        %v1117 = vpop.f32.mrb[0].mxu0
        %1118 = vmatprep.mubr.f32.mxu0 0.0
        %1119 = vmatmul.mubr.f32.gmra.mrb[0].mxu0 %v963
        %v1120 = vpop.f32.mrb[0].mxu0
        %v1121 = vadd.f32 %v987, %v1120
        %v1122 = vpop.f32.mrb[0].mxu0
        %1123 = vmatprep.mubr.f32.mxu0 0.0
        %1124 = vmatmul.mubr.f32.gmra.mrb[0].mxu0 %v964
        %v1125 = vpop.f32.mrb[0].mxu0
        %v1126 = vadd.f32 %v987, %v1125
        %v1127 = vpop.f32.mrb[0].mxu0
        %1128 = vmatprep.mubr.f32.mxu0 0.0
        %1129 = vmatmul.mubr.f32.gmra.mrb[0].mxu0 %v965
        %v1130 = vpop.f32.mrb[0].mxu0
        %v1131 = vadd.f32 %v987, %v1130
        %v1132 = vpop.f32.mrb[0].mxu0
        %1133 = vdwg.mxu0
        %v1134 = vsub.f32 0.0, %v1056
        %v1135 = vsub.f32 0.0, %v1061
        %v1136 = vsub.f32 0.0, %v1066
        %v1137 = vsub.f32 0.0, %v1071
        %v1138 = vsub.f32 0.0, %v1076
        %v1139 = vsub.f32 0.0, %v1081
        %v1140 = vsub.f32 0.0, %v1086
        %v1141 = vsub.f32 0.0, %v1091
        %v1142 = vsub.f32 0.0, %v1096
        %v1143 = vsub.f32 0.0, %v1101
        %v1144 = vsub.f32 0.0, %v1106
        %v1145 = vsub.f32 0.0, %v1111
        %v1146 = vsub.f32 0.0, %v1116
        %v1147 = vsub.f32 0.0, %v1121
        %v1148 = vsub.f32 0.0, %v1126
        %v1149 = vsub.f32 0.0, %v1131
        %v1150 = vmul.f32 %v1134, 1.442695
        %v1151 = vpow.pop %v1150
        %v1152 = vmul.f32 %v1135, 1.442695
        %v1153 = vpow.pop %v1152
        %v1154 = vmul.f32 %v1136, 1.442695
        %v1155 = vpow.pop %v1154
        %v1156 = vmul.f32 %v1137, 1.442695
        %v1157 = vpow.pop %v1156
        %v1158 = vmul.f32 %v1138, 1.442695
        %v1159 = vpow.pop %v1158
        %v1160 = vmul.f32 %v1139, 1.442695
        %v1161 = vpow.pop %v1160
        %v1162 = vmul.f32 %v1140, 1.442695
        %v1163 = vpow.pop %v1162
        %v1164 = vmul.f32 %v1141, 1.442695
        %v1165 = vpow.pop %v1164
        %v1166 = vmul.f32 %v1142, 1.442695
        %v1167 = vpow.pop %v1166
        %v1168 = vmul.f32 %v1143, 1.442695
        %v1169 = vpow.pop %v1168
        %v1170 = vmul.f32 %v1144, 1.442695
        %v1171 = vpow.pop %v1170
        %v1172 = vmul.f32 %v1145, 1.442695
        %v1173 = vpow.pop %v1172
        %v1174 = vmul.f32 %v1146, 1.442695
        %v1175 = vpow.pop %v1174
        %v1176 = vmul.f32 %v1147, 1.442695
        %v1177 = vpow.pop %v1176
        %v1178 = vmul.f32 %v1148, 1.442695
        %v1179 = vpow.pop %v1178
        %v1180 = vmul.f32 %v1149, 1.442695
        %v1181 = vpow.pop %v1180
        %v1182 = vadd.f32 %v1151, 1.0
        %v1183 = vadd.f32 %v1153, 1.0
        %v1184 = vadd.f32 %v1155, 1.0
        %v1185 = vadd.f32 %v1157, 1.0
        %v1186 = vadd.f32 %v1159, 1.0
        %v1187 = vadd.f32 %v1161, 1.0
        %v1188 = vadd.f32 %v1163, 1.0
        %v1189 = vadd.f32 %v1165, 1.0
        %v1190 = vadd.f32 %v1167, 1.0
        %v1191 = vadd.f32 %v1169, 1.0
        %v1192 = vadd.f32 %v1171, 1.0
        %v1193 = vadd.f32 %v1173, 1.0
        %v1194 = vadd.f32 %v1175, 1.0
        %v1195 = vadd.f32 %v1177, 1.0
        %v1196 = vadd.f32 %v1179, 1.0
        %v1197 = vadd.f32 %v1181, 1.0
        %v1198 = vrcp.pop %v1182
        %v1199 = vrcp.pop %v1183
        %v1200 = vrcp.pop %v1184
        %v1201 = vrcp.pop %v1185
        %v1202 = vrcp.pop %v1186
        %v1203 = vrcp.pop %v1187
        %v1204 = vrcp.pop %v1188
        %v1205 = vrcp.pop %v1189
        %v1206 = vrcp.pop %v1190
        %v1207 = vrcp.pop %v1191
        %v1208 = vrcp.pop %v1192
        %v1209 = vrcp.pop %v1193
        %v1210 = vrcp.pop %v1194
        %v1211 = vrcp.pop %v1195
        %v1212 = vrcp.pop %v1196
        %v1213 = vrcp.pop %v1197
        %v1214 = vmul.f32 %v1056, %v1198
        %v1215 = vmul.f32 %v1061, %v1199
        %v1216 = vmul.f32 %v1066, %v1200
        %v1217 = vmul.f32 %v1071, %v1201
        %v1218 = vmul.f32 %v1076, %v1202
        %v1219 = vmul.f32 %v1081, %v1203
        %v1220 = vmul.f32 %v1086, %v1204
        %v1221 = vmul.f32 %v1091, %v1205
        %v1222 = vmul.f32 %v1096, %v1206
        %v1223 = vmul.f32 %v1101, %v1207
        %v1224 = vmul.f32 %v1106, %v1208
        %v1225 = vmul.f32 %v1111, %v1209
        %v1226 = vmul.f32 %v1116, %v1210
        %v1227 = vmul.f32 %v1121, %v1211
        %v1228 = vmul.f32 %v1126, %v1212
        %v1229 = vmul.f32 %v1131, %v1213
        %v1230 = vld [vmem:[%s7] sm:$0xff]
        %v1231 = vld [vmem:[%s7 + $0x8] sm:$0xff]
        %v1232 = vld [vmem:[%s7 + $0x10] sm:$0xff]
        %v1233 = vld [vmem:[%s7 + $0x18] sm:$0xff]
        %v1234 = vld [vmem:[%s7 + $0x20] sm:$0xff]
        %v1235 = vld [vmem:[%s7 + $0x28] sm:$0xff]
        %v1236 = vld [vmem:[%s7 + $0x30] sm:$0xff]
        %v1237 = vld [vmem:[%s7 + $0x38] sm:$0xff]
        %v1238 = vld [vmem:[%s7 + $0x40] sm:$0xff]
        %v1239 = vld [vmem:[%s7 + $0x48] sm:$0xff]
        %v1240 = vld [vmem:[%s7 + $0x50] sm:$0xff]
        %v1241 = vld [vmem:[%s7 + $0x58] sm:$0xff]
        %v1242 = vld [vmem:[%s7 + $0x60] sm:$0xff]
        %v1243 = vld [vmem:[%s7 + $0x68] sm:$0xff]
        %v1244 = vld [vmem:[%s7 + $0x70] sm:$0xff]
        %v1245 = vld [vmem:[%s7 + $0x78] sm:$0xff]
        %v1246 = vld [vmem:[%s8] sm:$0x1]
        %v1248 = vlaneseq
        %v1249 = vshrl.u32 %v1248, 7
        %v1250 = vsub.s32 0, %v1249
        %v1251 = vrot.slane %v1246, %v1250
        %1253 = vmatprep.subr.mxu0 0.0
        %1254 = vmatpush1.msra.mxu0 %v1230
        %1255 = vmatprep.subr.mxu0 0.0
        %1256 = vmatpush1.msra.mxu0 %v1231
        %1257 = vmatprep.subr.mxu0 0.0
        %1258 = vmatpush1.msra.mxu0 %v1232
        %1259 = vmatprep.subr.mxu0 0.0
        %1260 = vmatpush1.msra.mxu0 %v1233
        %1261 = vmatprep.subr.mxu0 0.0
        %1262 = vmatpush1.msra.mxu0 %v1234
        %1263 = vmatprep.subr.mxu0 0.0
        %1264 = vmatpush1.msra.mxu0 %v1235
        %1265 = vmatprep.subr.mxu0 0.0
        %1266 = vmatpush1.msra.mxu0 %v1236
        %1267 = vmatprep.subr.mxu0 0.0
        %1268 = vmatpush1.msra.mxu0 %v1237
        %1269 = vmatprep.subr.mxu0 0.0
        %1270 = vmatpush1.msra.mxu0 %v1238
        %1271 = vmatprep.subr.mxu0 0.0
        %1272 = vmatpush1.msra.mxu0 %v1239
        %1273 = vmatprep.subr.mxu0 0.0
        %1274 = vmatpush1.msra.mxu0 %v1240
        %1275 = vmatprep.subr.mxu0 0.0
        %1276 = vmatpush1.msra.mxu0 %v1241
        %1277 = vmatprep.subr.mxu0 0.0
        %1278 = vmatpush1.msra.mxu0 %v1242
        %1279 = vmatprep.subr.mxu0 0.0
        %1280 = vmatpush1.msra.mxu0 %v1243
        %1281 = vmatprep.subr.mxu0 0.0
        %1282 = vmatpush1.msra.mxu0 %v1244
        %1283 = vmatprep.subr.mxu0 0.0
        %1284 = vmatpush1.msra.mxu0 %v1245
        %1285 = vmatprep.subr.mxu0 0.0
        %1286 = vmatpush1.msra.mxu0 0.0
        %1287 = vmatprep.subr.mxu0 0.0
        %1288 = vmatpush1.msra.mxu0 0.0
        %1289 = vmatprep.subr.mxu0 0.0
        %1290 = vmatpush1.msra.mxu0 0.0
        %1291 = vmatprep.subr.mxu0 0.0
        %1292 = vmatpush1.msra.mxu0 0.0
        %1293 = vmatprep.subr.mxu0 0.0
        %1294 = vmatpush1.msra.mxu0 0.0
        %1295 = vmatprep.subr.mxu0 0.0
        %1296 = vmatpush1.msra.mxu0 0.0
        %1297 = vmatprep.subr.mxu0 0.0
        %1298 = vmatpush1.msra.mxu0 0.0
        %1299 = vmatprep.subr.mxu0 0.0
        %1300 = vmatpush1.msra.mxu0 0.0
        %1301 = vmatprep.subr.mxu0 0.0
        %1302 = vmatpush1.msra.mxu0 0.0
        %1303 = vmatprep.subr.mxu0 0.0
        %1304 = vmatpush1.msra.mxu0 0.0
        %1305 = vmatprep.subr.mxu0 0.0
        %1306 = vmatpush1.msra.mxu0 0.0
        %1307 = vmatprep.subr.mxu0 0.0
        %1308 = vmatpush1.msra.mxu0 0.0
        %1309 = vmatprep.subr.mxu0 0.0
        %1310 = vmatpush1.msra.mxu0 0.0
        %1311 = vmatprep.subr.mxu0 0.0
        %1312 = vmatpush1.msra.mxu0 0.0
        %1313 = vmatprep.subr.mxu0 0.0
        %1314 = vmatpush1.msra.mxu0 0.0
        %1315 = vmatprep.subr.mxu0 0.0
        %1316 = vmatpush1.msra.mxu0 0.0
        %1317 = vmatprep.mubr.f32.mxu0 0.0
        %1318 = vmatmul.mubr.f32.gmra.mrb[0].mxu0 %v1214
        %v1319 = vpop.f32.mrb[0].mxu0
        %v1320 = vadd.f32 %v1251, %v1319
        %v1321 = vpop.f32.mrb[0].mxu0
        %1322 = vmatprep.mubr.f32.mxu0 0.0
        %1323 = vmatmul.mubr.f32.gmra.mrb[0].mxu0 %v1215
        %v1324 = vpop.f32.mrb[0].mxu0
        %v1325 = vadd.f32 %v1251, %v1324
        %v1326 = vpop.f32.mrb[0].mxu0
        %1327 = vmatprep.mubr.f32.mxu0 0.0
        %1328 = vmatmul.mubr.f32.gmra.mrb[0].mxu0 %v1216
        %v1329 = vpop.f32.mrb[0].mxu0
        %v1330 = vadd.f32 %v1251, %v1329
        %v1331 = vpop.f32.mrb[0].mxu0
        %1332 = vmatprep.mubr.f32.mxu0 0.0
        %1333 = vmatmul.mubr.f32.gmra.mrb[0].mxu0 %v1217
        %v1334 = vpop.f32.mrb[0].mxu0
        %v1335 = vadd.f32 %v1251, %v1334
        %v1336 = vpop.f32.mrb[0].mxu0
        %1337 = vmatprep.mubr.f32.mxu0 0.0
        %1338 = vmatmul.mubr.f32.gmra.mrb[0].mxu0 %v1218
        %v1339 = vpop.f32.mrb[0].mxu0
        %v1340 = vadd.f32 %v1251, %v1339
        %v1341 = vpop.f32.mrb[0].mxu0
        %1342 = vmatprep.mubr.f32.mxu0 0.0
        %1343 = vmatmul.mubr.f32.gmra.mrb[0].mxu0 %v1219
        %v1344 = vpop.f32.mrb[0].mxu0
        %v1345 = vadd.f32 %v1251, %v1344
        %v1346 = vpop.f32.mrb[0].mxu0
        %1347 = vmatprep.mubr.f32.mxu0 0.0
        %1348 = vmatmul.mubr.f32.gmra.mrb[0].mxu0 %v1220
        %v1349 = vpop.f32.mrb[0].mxu0
        %v1350 = vadd.f32 %v1251, %v1349
        %v1351 = vpop.f32.mrb[0].mxu0
        %1352 = vmatprep.mubr.f32.mxu0 0.0
        %1353 = vmatmul.mubr.f32.gmra.mrb[0].mxu0 %v1221
        %v1354 = vpop.f32.mrb[0].mxu0
        %v1355 = vadd.f32 %v1251, %v1354
        %v1356 = vpop.f32.mrb[0].mxu0
        %1357 = vmatprep.mubr.f32.mxu0 0.0
        %1358 = vmatmul.mubr.f32.gmra.mrb[0].mxu0 %v1222
        %v1359 = vpop.f32.mrb[0].mxu0
        %v1360 = vadd.f32 %v1251, %v1359
        %v1361 = vpop.f32.mrb[0].mxu0
        %1362 = vmatprep.mubr.f32.mxu0 0.0
        %1363 = vmatmul.mubr.f32.gmra.mrb[0].mxu0 %v1223
        %v1364 = vpop.f32.mrb[0].mxu0
        %v1365 = vadd.f32 %v1251, %v1364
        %v1366 = vpop.f32.mrb[0].mxu0
        %1367 = vmatprep.mubr.f32.mxu0 0.0
        %1368 = vmatmul.mubr.f32.gmra.mrb[0].mxu0 %v1224
        %v1369 = vpop.f32.mrb[0].mxu0
        %v1370 = vadd.f32 %v1251, %v1369
        %v1371 = vpop.f32.mrb[0].mxu0
        %1372 = vmatprep.mubr.f32.mxu0 0.0
        %1373 = vmatmul.mubr.f32.gmra.mrb[0].mxu0 %v1225
        %v1374 = vpop.f32.mrb[0].mxu0
        %v1375 = vadd.f32 %v1251, %v1374
        %v1376 = vpop.f32.mrb[0].mxu0
        %1377 = vmatprep.mubr.f32.mxu0 0.0
        %1378 = vmatmul.mubr.f32.gmra.mrb[0].mxu0 %v1226
        %v1379 = vpop.f32.mrb[0].mxu0
        %v1380 = vadd.f32 %v1251, %v1379
        %v1381 = vpop.f32.mrb[0].mxu0
        %1382 = vmatprep.mubr.f32.mxu0 0.0
        %1383 = vmatmul.mubr.f32.gmra.mrb[0].mxu0 %v1227
        %v1384 = vpop.f32.mrb[0].mxu0
        %v1385 = vadd.f32 %v1251, %v1384
        %v1386 = vpop.f32.mrb[0].mxu0
        %1387 = vmatprep.mubr.f32.mxu0 0.0
        %1388 = vmatmul.mubr.f32.gmra.mrb[0].mxu0 %v1228
        %v1389 = vpop.f32.mrb[0].mxu0
        %v1390 = vadd.f32 %v1251, %v1389
        %v1391 = vpop.f32.mrb[0].mxu0
        %1392 = vmatprep.mubr.f32.mxu0 0.0
        %1393 = vmatmul.mubr.f32.gmra.mrb[0].mxu0 %v1229
        %v1394 = vpop.f32.mrb[0].mxu0
        %v1395 = vadd.f32 %v1251, %v1394
        %v1396 = vpop.f32.mrb[0].mxu0
        %1397 = vdwg.mxu0
        %v1398 = vsub.f32 0.0, %v1320
        %v1399 = vsub.f32 0.0, %v1325
        %v1400 = vsub.f32 0.0, %v1330
        %v1401 = vsub.f32 0.0, %v1335
        %v1402 = vsub.f32 0.0, %v1340
        %v1403 = vsub.f32 0.0, %v1345
        %v1404 = vsub.f32 0.0, %v1350
        %v1405 = vsub.f32 0.0, %v1355
        %v1406 = vsub.f32 0.0, %v1360
        %v1407 = vsub.f32 0.0, %v1365
        %v1408 = vsub.f32 0.0, %v1370
        %v1409 = vsub.f32 0.0, %v1375
        %v1410 = vsub.f32 0.0, %v1380
        %v1411 = vsub.f32 0.0, %v1385
        %v1412 = vsub.f32 0.0, %v1390
        %v1413 = vsub.f32 0.0, %v1395
        %v1414 = vmul.f32 %v1398, 1.442695
        %v1415 = vpow.pop %v1414
        %v1416 = vmul.f32 %v1399, 1.442695
        %v1417 = vpow.pop %v1416
        %v1418 = vmul.f32 %v1400, 1.442695
        %v1419 = vpow.pop %v1418
        %v1420 = vmul.f32 %v1401, 1.442695
        %v1421 = vpow.pop %v1420
        %v1422 = vmul.f32 %v1402, 1.442695
        %v1423 = vpow.pop %v1422
        %v1424 = vmul.f32 %v1403, 1.442695
        %v1425 = vpow.pop %v1424
        %v1426 = vmul.f32 %v1404, 1.442695
        %v1427 = vpow.pop %v1426
        %v1428 = vmul.f32 %v1405, 1.442695
        %v1429 = vpow.pop %v1428
        %v1430 = vmul.f32 %v1406, 1.442695
        %v1431 = vpow.pop %v1430
        %v1432 = vmul.f32 %v1407, 1.442695
        %v1433 = vpow.pop %v1432
        %v1434 = vmul.f32 %v1408, 1.442695
        %v1435 = vpow.pop %v1434
        %v1436 = vmul.f32 %v1409, 1.442695
        %v1437 = vpow.pop %v1436
        %v1438 = vmul.f32 %v1410, 1.442695
        %v1439 = vpow.pop %v1438
        %v1440 = vmul.f32 %v1411, 1.442695
        %v1441 = vpow.pop %v1440
        %v1442 = vmul.f32 %v1412, 1.442695
        %v1443 = vpow.pop %v1442
        %v1444 = vmul.f32 %v1413, 1.442695
        %v1445 = vpow.pop %v1444
        %v1446 = vadd.f32 %v1415, 1.0
        %v1447 = vadd.f32 %v1417, 1.0
        %v1448 = vadd.f32 %v1419, 1.0
        %v1449 = vadd.f32 %v1421, 1.0
        %v1450 = vadd.f32 %v1423, 1.0
        %v1451 = vadd.f32 %v1425, 1.0
        %v1452 = vadd.f32 %v1427, 1.0
        %v1453 = vadd.f32 %v1429, 1.0
        %v1454 = vadd.f32 %v1431, 1.0
        %v1455 = vadd.f32 %v1433, 1.0
        %v1456 = vadd.f32 %v1435, 1.0
        %v1457 = vadd.f32 %v1437, 1.0
        %v1458 = vadd.f32 %v1439, 1.0
        %v1459 = vadd.f32 %v1441, 1.0
        %v1460 = vadd.f32 %v1443, 1.0
        %v1461 = vadd.f32 %v1445, 1.0
        %v1462 = vrcp.pop %v1446
        %v1463 = vrcp.pop %v1447
        %v1464 = vrcp.pop %v1448
        %v1465 = vrcp.pop %v1449
        %v1466 = vrcp.pop %v1450
        %v1467 = vrcp.pop %v1451
        %v1468 = vrcp.pop %v1452
        %v1469 = vrcp.pop %v1453
        %v1470 = vrcp.pop %v1454
        %v1471 = vrcp.pop %v1455
        %v1472 = vrcp.pop %v1456
        %v1473 = vrcp.pop %v1457
        %v1474 = vrcp.pop %v1458
        %v1475 = vrcp.pop %v1459
        %v1476 = vrcp.pop %v1460
        %v1477 = vrcp.pop %v1461
        %v1478 = vmul.f32 %v1320, %v1462
        %v1479 = vmul.f32 %v1325, %v1463
        %v1480 = vmul.f32 %v1330, %v1464
        %v1481 = vmul.f32 %v1335, %v1465
        %v1482 = vmul.f32 %v1340, %v1466
        %v1483 = vmul.f32 %v1345, %v1467
        %v1484 = vmul.f32 %v1350, %v1468
        %v1485 = vmul.f32 %v1355, %v1469
        %v1486 = vmul.f32 %v1360, %v1470
        %v1487 = vmul.f32 %v1365, %v1471
        %v1488 = vmul.f32 %v1370, %v1472
        %v1489 = vmul.f32 %v1375, %v1473
        %v1490 = vmul.f32 %v1380, %v1474
        %v1491 = vmul.f32 %v1385, %v1475
        %v1492 = vmul.f32 %v1390, %v1476
        %v1493 = vmul.f32 %v1395, %v1477
        %v1494 = vmul.f32 %v686, 0.5
        %v1495 = vmul.f32 %v687, 0.5
        %v1496 = vmul.f32 %v688, 0.5
        %v1497 = vmul.f32 %v689, 0.5
        %v1498 = vmul.f32 %v690, 0.5
        %v1499 = vmul.f32 %v691, 0.5
        %v1500 = vmul.f32 %v692, 0.5
        %v1501 = vmul.f32 %v693, 0.5
        %v1502 = vmul.f32 %v694, 0.5
        %v1503 = vmul.f32 %v695, 0.5
        %v1504 = vmul.f32 %v696, 0.5
        %v1505 = vmul.f32 %v697, 0.5
        %v1506 = vmul.f32 %v698, 0.5
        %v1507 = vmul.f32 %v699, 0.5
        %v1508 = vmul.f32 %v700, 0.5
        %v1509 = vmul.f32 %v701, 0.5
        %v1510 = vadd.f32 %v1478, %v1494
        %v1511 = vadd.f32 %v1479, %v1495
        %v1512 = vadd.f32 %v1480, %v1496
        %v1513 = vadd.f32 %v1481, %v1497
        %v1514 = vadd.f32 %v1482, %v1498
        %v1515 = vadd.f32 %v1483, %v1499
        %v1516 = vadd.f32 %v1484, %v1500
        %v1517 = vadd.f32 %v1485, %v1501
        %v1518 = vadd.f32 %v1486, %v1502
        %v1519 = vadd.f32 %v1487, %v1503
        %v1520 = vadd.f32 %v1488, %v1504
        %v1521 = vadd.f32 %v1489, %v1505
        %v1522 = vadd.f32 %v1490, %v1506
        %v1523 = vadd.f32 %v1491, %v1507
        %v1524 = vadd.f32 %v1492, %v1508
        %v1525 = vadd.f32 %v1493, %v1509
        %v1526 = vld [vmem:[#allocation2] sm:$0xff]
        %v1527 = vld [vmem:[#allocation2 + $0x8] sm:$0xff]
        %v1528 = vld [vmem:[#allocation2 + $0x10] sm:$0xff]
        %v1529 = vld [vmem:[#allocation2 + $0x18] sm:$0xff]
        %v1530 = vld [vmem:[#allocation2 + $0x20] sm:$0xff]
        %v1531 = vld [vmem:[#allocation2 + $0x28] sm:$0xff]
        %v1532 = vld [vmem:[#allocation2 + $0x30] sm:$0xff]
        %v1533 = vld [vmem:[#allocation2 + $0x38] sm:$0xff]
        %v1534 = vld [vmem:[#allocation2 + $0x40] sm:$0xff]
        %v1535 = vld [vmem:[#allocation2 + $0x48] sm:$0xff]
        %v1536 = vld [vmem:[#allocation2 + $0x50] sm:$0xff]
        %v1537 = vld [vmem:[#allocation2 + $0x58] sm:$0xff]
        %v1538 = vld [vmem:[#allocation2 + $0x60] sm:$0xff]
        %v1539 = vld [vmem:[#allocation2 + $0x68] sm:$0xff]
        %v1540 = vld [vmem:[#allocation2 + $0x70] sm:$0xff]
        %v1541 = vld [vmem:[#allocation2 + $0x78] sm:$0xff]
        %v1542 = vld [vmem:[%s10] sm:$0x1]
        %v1544 = vlaneseq
        %v1545 = vshrl.u32 %v1544, 7
        %v1546 = vsub.s32 0, %v1545
        %v1547 = vrot.slane %v1542, %v1546
        %1549 = vmatprep.subr.mxu0 0.0
        %1550 = vmatpush1.msra.mxu0 %v1526
        %1551 = vmatprep.subr.mxu0 0.0
        %1552 = vmatpush1.msra.mxu0 %v1527
        %1553 = vmatprep.subr.mxu0 0.0
        %1554 = vmatpush1.msra.mxu0 %v1528
        %1555 = vmatprep.subr.mxu0 0.0
        %1556 = vmatpush1.msra.mxu0 %v1529
        %1557 = vmatprep.subr.mxu0 0.0
        %1558 = vmatpush1.msra.mxu0 %v1530
        %1559 = vmatprep.subr.mxu0 0.0
        %1560 = vmatpush1.msra.mxu0 %v1531
        %1561 = vmatprep.subr.mxu0 0.0
        %1562 = vmatpush1.msra.mxu0 %v1532
        %1563 = vmatprep.subr.mxu0 0.0
        %1564 = vmatpush1.msra.mxu0 %v1533
        %1565 = vmatprep.subr.mxu0 0.0
        %1566 = vmatpush1.msra.mxu0 %v1534
        %1567 = vmatprep.subr.mxu0 0.0
        %1568 = vmatpush1.msra.mxu0 %v1535
        %1569 = vmatprep.subr.mxu0 0.0
        %1570 = vmatpush1.msra.mxu0 %v1536
        %1571 = vmatprep.subr.mxu0 0.0
        %1572 = vmatpush1.msra.mxu0 %v1537
        %1573 = vmatprep.subr.mxu0 0.0
        %1574 = vmatpush1.msra.mxu0 %v1538
        %1575 = vmatprep.subr.mxu0 0.0
        %1576 = vmatpush1.msra.mxu0 %v1539
        %1577 = vmatprep.subr.mxu0 0.0
        %1578 = vmatpush1.msra.mxu0 %v1540
        %1579 = vmatprep.subr.mxu0 0.0
        %1580 = vmatpush1.msra.mxu0 %v1541
        %1581 = vmatprep.subr.mxu0 0.0
        %1582 = vmatpush1.msra.mxu0 0.0
        %1583 = vmatprep.subr.mxu0 0.0
        %1584 = vmatpush1.msra.mxu0 0.0
        %1585 = vmatprep.subr.mxu0 0.0
        %1586 = vmatpush1.msra.mxu0 0.0
        %1587 = vmatprep.subr.mxu0 0.0
        %1588 = vmatpush1.msra.mxu0 0.0
        %1589 = vmatprep.subr.mxu0 0.0
        %1590 = vmatpush1.msra.mxu0 0.0
        %1591 = vmatprep.subr.mxu0 0.0
        %1592 = vmatpush1.msra.mxu0 0.0
        %1593 = vmatprep.subr.mxu0 0.0
        %1594 = vmatpush1.msra.mxu0 0.0
        %1595 = vmatprep.subr.mxu0 0.0
        %1596 = vmatpush1.msra.mxu0 0.0
        %1597 = vmatprep.subr.mxu0 0.0
        %1598 = vmatpush1.msra.mxu0 0.0
        %1599 = vmatprep.subr.mxu0 0.0
        %1600 = vmatpush1.msra.mxu0 0.0
        %1601 = vmatprep.subr.mxu0 0.0
        %1602 = vmatpush1.msra.mxu0 0.0
        %1603 = vmatprep.subr.mxu0 0.0
        %1604 = vmatpush1.msra.mxu0 0.0
        %1605 = vmatprep.subr.mxu0 0.0
        %1606 = vmatpush1.msra.mxu0 0.0
        %1607 = vmatprep.subr.mxu0 0.0
        %1608 = vmatpush1.msra.mxu0 0.0
        %1609 = vmatprep.subr.mxu0 0.0
        %1610 = vmatpush1.msra.mxu0 0.0
        %1611 = vmatprep.subr.mxu0 0.0
        %1612 = vmatpush1.msra.mxu0 0.0
        %1613 = vmatprep.mubr.f32.mxu0 0.0
        %1614 = vmatmul.mubr.f32.gmra.mrb[0].mxu0 %v1510
        %v1615 = vpop.f32.mrb[0].mxu0
        %v1616 = vadd.f32 %v1547, %v1615
        %v1617 = vpop.f32.mrb[0].mxu0
        %1618 = vmatprep.mubr.f32.mxu0 0.0
        %1619 = vmatmul.mubr.f32.gmra.mrb[0].mxu0 %v1511
        %v1620 = vpop.f32.mrb[0].mxu0
        %v1621 = vadd.f32 %v1547, %v1620
        %v1622 = vpop.f32.mrb[0].mxu0
        %1623 = vmatprep.mubr.f32.mxu0 0.0
        %1624 = vmatmul.mubr.f32.gmra.mrb[0].mxu0 %v1512
        %v1625 = vpop.f32.mrb[0].mxu0
        %v1626 = vadd.f32 %v1547, %v1625
        %v1627 = vpop.f32.mrb[0].mxu0
        %1628 = vmatprep.mubr.f32.mxu0 0.0
        %1629 = vmatmul.mubr.f32.gmra.mrb[0].mxu0 %v1513
        %v1630 = vpop.f32.mrb[0].mxu0
        %v1631 = vadd.f32 %v1547, %v1630
        %v1632 = vpop.f32.mrb[0].mxu0
        %1633 = vmatprep.mubr.f32.mxu0 0.0
        %1634 = vmatmul.mubr.f32.gmra.mrb[0].mxu0 %v1514
        %v1635 = vpop.f32.mrb[0].mxu0
        %v1636 = vadd.f32 %v1547, %v1635
        %v1637 = vpop.f32.mrb[0].mxu0
        %1638 = vmatprep.mubr.f32.mxu0 0.0
        %1639 = vmatmul.mubr.f32.gmra.mrb[0].mxu0 %v1515
        %v1640 = vpop.f32.mrb[0].mxu0
        %v1641 = vadd.f32 %v1547, %v1640
        %v1642 = vpop.f32.mrb[0].mxu0
        %1643 = vmatprep.mubr.f32.mxu0 0.0
        %1644 = vmatmul.mubr.f32.gmra.mrb[0].mxu0 %v1516
        %v1645 = vpop.f32.mrb[0].mxu0
        %v1646 = vadd.f32 %v1547, %v1645
        %v1647 = vpop.f32.mrb[0].mxu0
        %1648 = vmatprep.mubr.f32.mxu0 0.0
        %1649 = vmatmul.mubr.f32.gmra.mrb[0].mxu0 %v1517
        %v1650 = vpop.f32.mrb[0].mxu0
        %v1651 = vadd.f32 %v1547, %v1650
        %v1652 = vpop.f32.mrb[0].mxu0
        %1653 = vmatprep.mubr.f32.mxu0 0.0
        %1654 = vmatmul.mubr.f32.gmra.mrb[0].mxu0 %v1518
        %v1655 = vpop.f32.mrb[0].mxu0
        %v1656 = vadd.f32 %v1547, %v1655
        %v1657 = vpop.f32.mrb[0].mxu0
        %1658 = vmatprep.mubr.f32.mxu0 0.0
        %1659 = vmatmul.mubr.f32.gmra.mrb[0].mxu0 %v1519
        %v1660 = vpop.f32.mrb[0].mxu0
        %v1661 = vadd.f32 %v1547, %v1660
        %v1662 = vpop.f32.mrb[0].mxu0
        %1663 = vmatprep.mubr.f32.mxu0 0.0
        %1664 = vmatmul.mubr.f32.gmra.mrb[0].mxu0 %v1520
        %v1665 = vpop.f32.mrb[0].mxu0
        %v1666 = vadd.f32 %v1547, %v1665
        %v1667 = vpop.f32.mrb[0].mxu0
        %1668 = vmatprep.mubr.f32.mxu0 0.0
        %1669 = vmatmul.mubr.f32.gmra.mrb[0].mxu0 %v1521
        %v1670 = vpop.f32.mrb[0].mxu0
        %v1671 = vadd.f32 %v1547, %v1670
        %v1672 = vpop.f32.mrb[0].mxu0
        %1673 = vmatprep.mubr.f32.mxu0 0.0
        %1674 = vmatmul.mubr.f32.gmra.mrb[0].mxu0 %v1522
        %v1675 = vpop.f32.mrb[0].mxu0
        %v1676 = vadd.f32 %v1547, %v1675
        %v1677 = vpop.f32.mrb[0].mxu0
        %1678 = vmatprep.mubr.f32.mxu0 0.0
        %1679 = vmatmul.mubr.f32.gmra.mrb[0].mxu0 %v1523
        %v1680 = vpop.f32.mrb[0].mxu0
        %v1681 = vadd.f32 %v1547, %v1680
        %v1682 = vpop.f32.mrb[0].mxu0
        %1683 = vmatprep.mubr.f32.mxu0 0.0
        %1684 = vmatmul.mubr.f32.gmra.mrb[0].mxu0 %v1524
        %v1685 = vpop.f32.mrb[0].mxu0
        %v1686 = vadd.f32 %v1547, %v1685
        %v1687 = vpop.f32.mrb[0].mxu0
        %1688 = vmatprep.mubr.f32.mxu0 0.0
        %1689 = vmatmul.mubr.f32.gmra.mrb[0].mxu0 %v1525
        %v1690 = vpop.f32.mrb[0].mxu0
        %v1691 = vadd.f32 %v1547, %v1690
        %v1692 = vpop.f32.mrb[0].mxu0
        %1693 = vdwg.mxu0
        %1694 = vst [vmem:[%s395] sm:$0xff] %v1616
        %1695 = vst [vmem:[%s395 + $0x8] sm:$0xff] %v1621
        %1696 = vst [vmem:[%s395 + $0x10] sm:$0xff] %v1626
        %1697 = vst [vmem:[%s395 + $0x18] sm:$0xff] %v1631
        %1698 = vst [vmem:[%s395 + $0x20] sm:$0xff] %v1636
        %1699 = vst [vmem:[%s395 + $0x28] sm:$0xff] %v1641
        %1700 = vst [vmem:[%s395 + $0x30] sm:$0xff] %v1646
        %1701 = vst [vmem:[%s395 + $0x38] sm:$0xff] %v1651
        %1702 = vst [vmem:[%s395 + $0x40] sm:$0xff] %v1656
        %1703 = vst [vmem:[%s395 + $0x48] sm:$0xff] %v1661
        %1704 = vst [vmem:[%s395 + $0x50] sm:$0xff] %v1666
        %1705 = vst [vmem:[%s395 + $0x58] sm:$0xff] %v1671
        %1706 = vst [vmem:[%s395 + $0x60] sm:$0xff] %v1676
        %1707 = vst [vmem:[%s395 + $0x68] sm:$0xff] %v1681
        %1708 = vst [vmem:[%s395 + $0x70] sm:$0xff] %v1686
        %1709 = vst [vmem:[%s395 + $0x78] sm:$0xff] %v1691
        %s1710 = sand.u32 %s270, 1
        %s1711 = scalar_lea.sflag [#allocation4], %s1710
        %s1712 = sand.u32 %s270, 1
        %s1713 = smul.addr %s1712, 128
        %s1714 = scalar_lea.vmem [#allocation5], %s1713
        // Predicated region
        $region69: #{tpu_custom_call.1} parent=63 // pred_check
          %p1715 = pneg %p280
        $region70: #{tpu_custom_call.1} parent=63 // pred_check_branch
          %1717 = sbr.rel (%p1715) target = $region72
        $region71: #{tpu_custom_call.1} parent=63 // pred_region
          %s1718 = smul.u32 16, %s26
          %s1720 = ssub.s32 2048, 2048
          %1721 = vsyncadd %s1711, %s1720
          %s1722 = smul.addr %s1718, 128
          %s1723 = scalar_lea.hbm %s11, %s1722
          %s1724 = sshll.u32 %s1714, 4
          %s1725 = int_to_ptr.vmem [resolvable:$true] %s1724
          %1730 = dma.vmem_to_hbm [thread:$0]  %s1725, 2048, %s1723, %s1711, 128, 128, 8
        $region72: #{tpu_custom_call.1} parent=63 // pred_fallthru
          _
      $region64: #{tpu_custom_call.1} parent=5 // pred_fallthru
        _
      %p1731 = scmp.le.s32.totalorder 2, %s21
      // Predicated region
      $region73: #{tpu_custom_call.1} parent=5 // pred_check
        %p1732 = pneg %p1731
      $region74: #{tpu_custom_call.1} parent=5 // pred_check_branch
        %1734 = sbr.rel (%p1732) target = $region76
      $region75: #{tpu_custom_call.1} parent=5 // pred_region
        %s1735 = ssub.s32 %s21, 2
        // Predicated region
        $region77: #{tpu_custom_call.1} parent=75 // pred_check
          %p1736 = pneg %p286
        $region78: #{tpu_custom_call.1} parent=75 // pred_check_branch
          %1738 = sbr.rel (%p1736) target = $region80
        $region79: #{tpu_custom_call.1} parent=75 // pred_region
          %s1739 = sand.u32 %s271, 1
          %s1740 = scalar_lea.sflag [#allocation4], %s1739
          %s1741 = sand.u32 %s271, 1
          %s1742 = smul.addr %s1741, 128
          %s1743 = scalar_lea.vmem [#allocation5], %s1742
          %1744 = dma.done %s1740, 2048
        $region80: #{tpu_custom_call.1} parent=75 // pred_fallthru
          _
      $region76: #{tpu_custom_call.1} parent=5 // pred_fallthru
        _
    $region6: #{tpu_custom_call.1} parent=1 // loop_footer
      %s25 = sadd.s32 1, %s21
    $region7: #{tpu_custom_call.1} parent=1 // loop_footer_branch
      %20 = sbr.rel target = $region3
    $region8: #{tpu_custom_call.1} parent=1 // loop_exit
      _
    %1745 = vsyncpa [#allocation3], 1
    %s1746 = scalar_lea.sflag [#allocation3], 1
    %1747 = vsyncpa %s1746, 1
    %1748 = vsyncpa [#allocation4], 1
    %s1749 = scalar_lea.sflag [#allocation4], 1
    %1750 = vsyncpa %s1749, 1

</llo_original>
